<compile_context>
chip_gen: v7x
topology: tpu7x:2x2x1
jax: 0.10.0
libtpu: 0.0.40
codegen_flags: <defaults>
</compile_context>

<pallas_src>
import math
import functools

import jax
import jax.numpy as jnp
from jax import lax
from jax.experimental import pallas as pl
from jax.experimental.pallas import tpu as pltpu


# ---------------------------------------------------------------------------
# Constants / small helpers
# ---------------------------------------------------------------------------

_LN_EPS = 1e-5
_SOFTSHRINK_LAMBDA = 0.01
_ROW_ALIGN = 16  # row-tile alignment (covers bf16 (16,128) sublane packing)


def _detect_vmem_capacity():
    """Generation-aware VMEM capacity (v5e/v6e: 128 MiB, v7x: 64 MiB)."""
    try:
        info = pltpu.get_tpu_info()
        cap = int(getattr(info, "vmem_capacity_bytes", 0))
        if cap > 0:
            return cap
    except Exception:
        pass
    return 64 * 1024 * 1024  # conservative default (works on every generation)


_VMEM_CAP = _detect_vmem_capacity()
_VMEM_LIMIT = min((3 * _VMEM_CAP) // 4, 100 * 1024 * 1024)
_ROW_TILE_TARGET = 1024 if _VMEM_CAP >= 128 * 1024 * 1024 else 512


def _round_up(x, m):
    return ((x + m - 1) // m) * m


def _choose_tile(m, target=None):
    """Row-tile tm that exactly divides round_up(m, _ROW_ALIGN) (no dead-row
    padding beyond <=15 rows).  Prefer the largest tm <= target that still
    leaves a grid of >= 2 steps so the 'parallel' axis can shard across both
    TensorCores on v7x / megacore."""
    if target is None:
        target = _ROW_TILE_TARGET
    m_pad = _round_up(m, _ROW_ALIGN)
    limit = min(target, m_pad)
    best_multi = None
    best_single = None
    t = _ROW_ALIGN
    while t <= limit:
        if m_pad % t == 0:
            if m_pad // t >= 2:
                best_multi = t
            else:
                best_single = t
        t += _ROW_ALIGN
    tm = best_multi if best_multi is not None else (best_single or _ROW_ALIGN)
    return tm, m_pad


def _pad_rows(x2d, m_pad):
    m = x2d.shape[0]
    if m_pad == m:
        return x2d
    return jnp.pad(x2d, ((0, m_pad - m), (0, 0)))


def _softshrink(x, lam):
    return jnp.where(x > lam, x - lam,
                     jnp.where(x < -lam, x + lam, jnp.zeros_like(x)))


def _gelu_exact(x):
    # PyTorch nn.GELU default (erf form)
    return 0.5 * x * (1.0 + lax.erf(x * (1.0 / math.sqrt(2.0))))


def _layernorm_rows(x, g, b):
    mean = jnp.mean(x, axis=-1, keepdims=True)
    xc = x - mean
    var = jnp.mean(xc * xc, axis=-1, keepdims=True)
    return xc * lax.rsqrt(var + _LN_EPS) * g + b


# ---------------------------------------------------------------------------
# Pallas kernels
# ---------------------------------------------------------------------------

def _layernorm_kernel(x_ref, g_ref, b_ref, o_ref):
    x = x_ref[...].astype(jnp.float32)                       # (TM, C)
    o_ref[...] = _layernorm_rows(x, g_ref[...], b_ref[...]).astype(o_ref.dtype)


def layernorm(x2d, gamma, beta, tm, out_dtype=jnp.bfloat16):
    """x2d: (M, C) f32 with M a multiple of tm; gamma/beta: (1, C) f32.
    Output streamed in bf16 (feeds the FFT / MXU path anyway)."""
    M, C = x2d.shape
    return pl.pallas_call(
        _layernorm_kernel,
        out_shape=jax.ShapeDtypeStruct((M, C), out_dtype),
        grid=(M // tm,),
        in_specs=[
            pl.BlockSpec((tm, C), lambda i: (i, 0)),
            pl.BlockSpec((1, C), lambda i: (0, 0)),
            pl.BlockSpec((1, C), lambda i: (0, 0)),
        ],
        out_specs=pl.BlockSpec((tm, C), lambda i: (i, 0)),
        compiler_params=pltpu.CompilerParams(
            dimension_semantics=("parallel",),
            vmem_limit_bytes=_VMEM_LIMIT),
    )(x2d, gamma, beta)


def _spectral_mix_kernel(xr_ref, xi_ref,
                         w1r_ref, w1d_ref, w1s_ref, b1r_ref, b1i_ref,
                         w2r_ref, w2d_ref, w2s_ref, b2r_ref, b2i_ref,
                         or_ref, oi_ref):
    xr = xr_ref[...]                                          # bf16 (TM, C)
    xi = xi_ref[...]
    # ---- layer 1: Gauss/Karatsuba 3-matmul complex product (bf16 MXU, f32 acc)
    k1 = jnp.dot(xr + xi, w1r_ref[...], preferred_element_type=jnp.float32)
    k2 = jnp.dot(xr, w1d_ref[...], preferred_element_type=jnp.float32)   # w_i - w_r
    k3 = jnp.dot(xi, w1s_ref[...], preferred_element_type=jnp.float32)   # w_r + w_i
    h_r = jnp.maximum(k1 - k3 + b1r_ref[...], 0.0).astype(jnp.bfloat16)
    h_i = jnp.maximum(k1 + k2 + b1i_ref[...], 0.0).astype(jnp.bfloat16)
    # ---- layer 2: same Gauss trick + softshrink; two direct lane-dense stores
    k1 = jnp.dot(h_r + h_i, w2r_ref[...], preferred_element_type=jnp.float32)
    k2 = jnp.dot(h_r, w2d_ref[...], preferred_element_type=jnp.float32)
    k3 = jnp.dot(h_i, w2s_ref[...], preferred_element_type=jnp.float32)
    or_ref[...] = _softshrink(k1 - k3 + b2r_ref[...],
                              _SOFTSHRINK_LAMBDA).astype(or_ref.dtype)
    oi_ref[...] = _softshrink(k1 + k2 + b2i_ref[...],
                              _SOFTSHRINK_LAMBDA).astype(oi_ref.dtype)


def spectral_mix(xr, xi, w1r, w1d, w1s, b1r, b1i, w2r, w2d, w2s, b2r, b2i, tm):
    """xr/xi: (M, C) bf16 rFFT real/imag modes (separate lane-dense streams).
    Weights are dense block-diagonal bf16 matrices, VMEM-resident across the grid.
    TODO(synk): for block_size >= ~128 switch the dense block-diagonal matmuls to
    per-block batched matmuls to avoid the num_blocks x MXU waste."""
    M, C = xr.shape
    Hsp = w1r.shape[1]
    flops = 6 * 2 * M * C * Hsp
    bytes_accessed = (4 * M * C * 2                 # xr, xi, or, oi (bf16)
                      + 6 * C * Hsp * 2             # bf16 weights
                      + 2 * Hsp * 4 + 2 * C * 4)    # biases
    row_spec = pl.BlockSpec((tm, C), lambda i: (i, 0))
    w1_spec = pl.BlockSpec((C, Hsp), lambda i: (0, 0))
    w2_spec = pl.BlockSpec((Hsp, C), lambda i: (0, 0))
    b1_spec = pl.BlockSpec((1, Hsp), lambda i: (0, 0))
    b2_spec = pl.BlockSpec((1, C), lambda i: (0, 0))
    return pl.pallas_call(
        _spectral_mix_kernel,
        out_shape=(jax.ShapeDtypeStruct((M, C), jnp.bfloat16),
                   jax.ShapeDtypeStruct((M, C), jnp.bfloat16)),
        grid=(M // tm,),
        in_specs=[row_spec, row_spec,
                  w1_spec, w1_spec, w1_spec, b1_spec, b1_spec,
                  w2_spec, w2_spec, w2_spec, b2_spec, b2_spec],
        out_specs=(row_spec, row_spec),
        compiler_params=pltpu.CompilerParams(
            dimension_semantics=("parallel",),
            vmem_limit_bytes=_VMEM_LIMIT),
        cost_estimate=pl.CostEstimate(flops=int(flops), transcendentals=0,
                                      bytes_accessed=int(bytes_accessed)),
    )(xr, xi, w1r, w1d, w1s, b1r, b1i, w2r, w2d, w2s, b2r, b2i)


def _ln_mlp_residual_kernel(x_ref, res_ref, g_ref, b_ref,
                            w1_ref, b1_ref, w2_ref, b2_ref, o_ref):
    x = x_ref[...].astype(jnp.float32)                        # (TM, C)
    xn = _layernorm_rows(x, g_ref[...], b_ref[...])
    h = jnp.dot(xn.astype(jnp.bfloat16), w1_ref[...],
                preferred_element_type=jnp.float32) + b1_ref[...]
    h = _gelu_exact(h).astype(jnp.bfloat16)     # bf16 hidden: halves VMEM peak
    y = jnp.dot(h, w2_ref[...], preferred_element_type=jnp.float32) + b2_ref[...]
    o_ref[...] = (y + res_ref[...].astype(jnp.float32)).astype(o_ref.dtype)


def ln_mlp_residual(x2d, res2d, gamma, beta, w1, b1, w2, b2, tm):
    """Fused: fc2(gelu(fc1(LayerNorm(x)))) + residual.  Rows tiled, weights
    resident.  Kept in f32 I/O to preserve output fidelity on the identity path."""
    M, C = x2d.shape
    hid = w1.shape[1]
    flops = 2 * 2 * M * C * hid
    transcendentals = M * hid
    bytes_accessed = (3 * M * C * 4                 # x, residual, out (f32)
                      + 2 * C * hid * 2             # bf16 weights
                      + (hid + 3 * C) * 4)          # biases + LN params
    return pl.pallas_call(
        _ln_mlp_residual_kernel,
        out_shape=jax.ShapeDtypeStruct((M, C), jnp.float32),
        grid=(M // tm,),
        in_specs=[
            pl.BlockSpec((tm, C), lambda i: (i, 0)),
            pl.BlockSpec((tm, C), lambda i: (i, 0)),
            pl.BlockSpec((1, C), lambda i: (0, 0)),
            pl.BlockSpec((1, C), lambda i: (0, 0)),
            pl.BlockSpec((C, hid), lambda i: (0, 0)),
            pl.BlockSpec((1, hid), lambda i: (0, 0)),
            pl.BlockSpec((hid, C), lambda i: (0, 0)),
            pl.BlockSpec((1, C), lambda i: (0, 0)),
        ],
        out_specs=pl.BlockSpec((tm, C), lambda i: (i, 0)),
        compiler_params=pltpu.CompilerParams(
            dimension_semantics=("parallel",),
            vmem_limit_bytes=_VMEM_LIMIT),
        cost_estimate=pl.CostEstimate(flops=int(flops),
                                      transcendentals=int(transcendentals),
                                      bytes_accessed=int(bytes_accessed)),
    )(x2d, res2d, gamma, beta, w1, b1, w2, b2)


# ---------------------------------------------------------------------------
# FourierBlock forward (wrapper / glue)
# ---------------------------------------------------------------------------

@functools.partial(jax.jit, static_argnames=("shape", "double_skip"))
def fourier_block_forward(x, pp, shape, double_skip=False):
    """x: (B, N, C) float32 tokens, shape=(H, W) with N == H*W.
    pp: prepared (bf16 / Gauss-derived) params from prepare_params()."""
    B, N, C = x.shape
    H, W = shape
    assert N == H * W

    x = x.astype(jnp.float32)
    residual = x

    # ---- norm1 (tiled Pallas LayerNorm; bf16 streamed output) ---------------
    M_tok = B * N
    tm_tok, M_tok_pad = _choose_tile(M_tok)
    x2d = _pad_rows(x.reshape(M_tok, C), M_tok_pad)
    xn1 = layernorm(x2d, pp["ln1_g"], pp["ln1_b"], tm_tok)[:M_tok]   # bf16

    # ---- AdaptiveSpectralConvolution (AFNO2D filter) -------------------------
    spec_bias = xn1                                           # filter-internal residual
    xs = xn1.reshape(B, H, W, C).astype(jnp.float32)
    # TODO(synk): rfft2/irfft2 stay in XLA (no Pallas FFT primitive); for small
    # H,W they could be fused as explicit real/imag DFT matmuls inside the
    # spectral kernel to remove the non-Pallas HBM round trips.
    xf = jnp.fft.rfft2(xs, axes=(1, 2), norm="ortho")         # (B, H, Wf, C) complex64
    Wf = xf.shape[2]
    M_sp = B * H * Wf
    tm_sp, M_sp_pad = _choose_tile(M_sp)
    xr = _pad_rows(jnp.real(xf).reshape(M_sp, C).astype(jnp.bfloat16), M_sp_pad)
    xi = _pad_rows(jnp.imag(xf).reshape(M_sp, C).astype(jnp.bfloat16), M_sp_pad)

    o_r, o_i = spectral_mix(
        xr, xi,
        pp["sp_w1r"], pp["sp_w1d"], pp["sp_w1s"], pp["sp_b1r"], pp["sp_b1i"],
        pp["sp_w2r"], pp["sp_w2d"], pp["sp_w2s"], pp["sp_b2r"], pp["sp_b2i"],
        tm_sp)
    of = lax.complex(o_r[:M_sp].astype(jnp.float32),
                     o_i[:M_sp].astype(jnp.float32)).reshape(B, H, Wf, C)
    x_sp = jnp.fft.irfft2(of, s=(H, W), axes=(1, 2), norm="ortho")
    x_sp = (x_sp.reshape(B, N, C).astype(jnp.float32)
            + spec_bias.reshape(B, N, C).astype(jnp.float32))

    # ---- optional double skip -------------------------------------------------
    if double_skip:
        x_sp = x_sp + residual
        residual = x_sp

    # ---- fused norm2 + MLP + drop_path(=identity) + residual ------------------
    x_sp2 = _pad_rows(x_sp.reshape(M_tok, C), M_tok_pad)
    res2 = _pad_rows(residual.reshape(M_tok, C), M_tok_pad)
    out = ln_mlp_residual(
        x_sp2, res2, pp["ln2_g"], pp["ln2_b"],
        pp["mlp_w1"], pp["mlp_b1"], pp["mlp_w2"], pp["mlp_b2"],
        tm_tok)
    return out[:M_tok].reshape(B, N, C)


# ---------------------------------------------------------------------------
# Parameter init (reference layout) and kernel-ready preparation
# ---------------------------------------------------------------------------

def init_params(key, in_channels, dim, mlp_ratio=4.0, hidden_size_factor=1):
    """Raw params mirroring the PyTorch module (f32, per-block spectral weights)."""
    C = in_channels
    num_blocks = dim
    assert C % num_blocks == 0
    bs = C // num_blocks
    bs_h = bs * hidden_size_factor
    hidden = int(C * mlp_ratio)
    scale = 0.02
    ks = jax.random.split(key, 6)
    return {
        "ln1_g": jnp.ones((C,), jnp.float32),
        "ln1_b": jnp.zeros((C,), jnp.float32),
        "ln2_g": jnp.ones((C,), jnp.float32),
        "ln2_b": jnp.zeros((C,), jnp.float32),
        "sp_w1": scale * jax.random.normal(ks[0], (2, num_blocks, bs, bs_h), jnp.float32),
        "sp_b1": scale * jax.random.normal(ks[1], (2, num_blocks, bs_h), jnp.float32),
        "sp_w2": scale * jax.random.normal(ks[2], (2, num_blocks, bs_h, bs), jnp.float32),
        "sp_b2": scale * jax.random.normal(ks[3], (2, num_blocks, bs), jnp.float32),
        "mlp_w1": scale * jax.random.normal(ks[4], (C, hidden), jnp.float32),
        "mlp_b1": jnp.zeros((hidden,), jnp.float32),
        "mlp_w2": scale * jax.random.normal(ks[5], (hidden, C), jnp.float32),
        "mlp_b2": jnp.zeros((C,), jnp.float32),
    }


def prepare_params(raw, in_channels, dim, mlp_ratio=4.0, hidden_size_factor=1):
    """Derive the Gauss weight combinations in f32, then cast MXU weights to bf16
    (f32 accumulation in-kernel).  No channel padding: Pallas blocks use the full
    channel/hidden dims, so arbitrary C works and small-C traffic is not inflated."""
    C = in_channels
    num_blocks = dim
    bs = C // num_blocks
    bs_h = bs * hidden_size_factor
    Hsp = num_blocks * bs_h
    del Hsp  # (implied by block_diag shapes below)

    def blockdiag(w):   # (num_blocks, i, o) -> dense (num_blocks*i, num_blocks*o)
        return jax.scipy.linalg.block_diag(*[w[k] for k in range(w.shape[0])])

    def row(v):
        return v.reshape(1, -1).astype(jnp.float32)

    # Dense block-diagonal spectral weights: fine while bs (=C/num_blocks) is far
    # below an MXU tile.  TODO(synk): for bs >= ~128 switch to per-block batched
    # matmuls instead of materializing the (mostly-zero) dense block-diagonal.
    w1r = blockdiag(raw["sp_w1"][0])          # (C, Hsp)
    w1i = blockdiag(raw["sp_w1"][1])
    w2r = blockdiag(raw["sp_w2"][0])          # (Hsp, C)
    w2i = blockdiag(raw["sp_w2"][1])

    bf = jnp.bfloat16
    return {
        "ln1_g": row(raw["ln1_g"]), "ln1_b": row(raw["ln1_b"]),
        "ln2_g": row(raw["ln2_g"]), "ln2_b": row(raw["ln2_b"]),
        # Gauss/Karatsuba precomputed combinations (combined in f32, then bf16).
        "sp_w1r": w1r.astype(bf),
        "sp_w1d": (w1i - w1r).astype(bf),
        "sp_w1s": (w1r + w1i).astype(bf),
        "sp_w2r": w2r.astype(bf),
        "sp_w2d": (w2i - w2r).astype(bf),
        "sp_w2s": (w2r + w2i).astype(bf),
        "sp_b1r": row(raw["sp_b1"][0].reshape(-1)),
        "sp_b1i": row(raw["sp_b1"][1].reshape(-1)),
        "sp_b2r": row(raw["sp_b2"][0].reshape(-1)),
        "sp_b2i": row(raw["sp_b2"][1].reshape(-1)),
        "mlp_w1": raw["mlp_w1"].astype(bf),
        "mlp_b1": row(raw["mlp_b1"]),
        "mlp_w2": raw["mlp_w2"].astype(bf),
        "mlp_b2": row(raw["mlp_b2"]),
    }


# ---------------------------------------------------------------------------
# Main
# ---------------------------------------------------------------------------

if __name__ == "__main__":
    key = jax.random.PRNGKey(0)
    k_x, k_p = jax.random.split(key)

    B, H, W = 2, 8, 8
    in_channels = 16          # C
    dim = 4                   # num_blocks of the adaptive spectral convolution
    N = H * W

    x = jax.random.normal(k_x, (B, N, in_channels), jnp.float32)
    raw_params = init_params(k_p, in_channels, dim, mlp_ratio=4.0)
    pp = prepare_params(raw_params, in_channels, dim, mlp_ratio=4.0)

    out = fourier_block_forward(x, pp, shape=(H, W), double_skip=False)
    jax.block_until_ready(out)

    assert out.shape == (B, N, in_channels)
    assert bool(jnp.all(jnp.isfinite(out)))
    print("KERNEL_OK")
</pallas_src>

<mosaic_0001>
module attributes {stable_mosaic.version = 11 : i64} {
  func.func @_layernorm_kernel(%arg0: i32, %arg1: memref<64x16xf32, #tpu.memory_space<vmem>>, %arg2: memref<1x16xf32, #tpu.memory_space<vmem>>, %arg3: memref<1x16xf32, #tpu.memory_space<vmem>>, %arg4: memref<64x16xbf16, #tpu.memory_space<vmem>>) attributes {dimension_semantics = [#tpu.dimension_semantics<parallel>], iteration_bounds = array<i64: 2>, scalar_prefetch = 0 : i64, scratch_operands = 0 : i64, tpu.core_type = #tpu.core_type<tc>, window_params = [{transform_indices = @transform_0, window_bounds = array<i64: 64, 16>}, {pipeline_mode = #tpu.pipeline_mode<synchronous>, transform_indices = @transform_1, window_bounds = array<i64: 1, 16>}, {pipeline_mode = #tpu.pipeline_mode<synchronous>, transform_indices = @transform_2, window_bounds = array<i64: 1, 16>}, {transform_indices = @transform_3, window_bounds = array<i64: 64, 16>}]} {
    %c0 = arith.constant 0 : index
    %c0_0 = arith.constant 0 : index
    %0 = vector.load %arg1[%c0, %c0_0] : memref<64x16xf32, #tpu.memory_space<vmem>>, vector<64x16xf32>
    %c0_1 = arith.constant 0 : index
    %c0_2 = arith.constant 0 : index
    %1 = vector.load %arg2[%c0_1, %c0_2] : memref<1x16xf32, #tpu.memory_space<vmem>>, vector<1x16xf32>
    %c0_3 = arith.constant 0 : index
    %c0_4 = arith.constant 0 : index
    %2 = vector.load %arg3[%c0_3, %c0_4] : memref<1x16xf32, #tpu.memory_space<vmem>>, vector<1x16xf32>
    %cst = arith.constant dense<0.000000e+00> : vector<64xf32>
    %3 = vector.multi_reduction <add>, %0, %cst [1] : vector<64x16xf32> to vector<64xf32>
    %4 = vector.shape_cast %3 : vector<64xf32> to vector<64x1xf32>
    %cst_5 = arith.constant 1.600000e+01 : f32
    %5 = vector.broadcast %cst_5 : f32 to vector<64x1xf32>
    %6 = arith.divf %4, %5 : vector<64x1xf32>
    %7 = vector.broadcast %6 : vector<64x1xf32> to vector<64x16xf32>
    %8 = arith.subf %0, %7 : vector<64x16xf32>
    %9 = arith.mulf %8, %8 : vector<64x16xf32>
    %cst_6 = arith.constant dense<0.000000e+00> : vector<64xf32>
    %10 = vector.multi_reduction <add>, %9, %cst_6 [1] : vector<64x16xf32> to vector<64xf32>
    %11 = vector.shape_cast %10 : vector<64xf32> to vector<64x1xf32>
    %cst_7 = arith.constant 1.600000e+01 : f32
    %12 = vector.broadcast %cst_7 : f32 to vector<64x1xf32>
    %13 = arith.divf %11, %12 : vector<64x1xf32>
    %cst_8 = arith.constant 9.99999974E-6 : f32
    %14 = vector.broadcast %cst_8 : f32 to vector<64x1xf32>
    %15 = arith.addf %13, %14 : vector<64x1xf32>
    %16 = math.rsqrt %15 : vector<64x1xf32>
    %17 = vector.broadcast %16 : vector<64x1xf32> to vector<64x16xf32>
    %18 = arith.mulf %8, %17 : vector<64x16xf32>
    %19 = vector.broadcast %1 : vector<1x16xf32> to vector<64x16xf32>
    %20 = arith.mulf %18, %19 : vector<64x16xf32>
    %21 = vector.broadcast %2 : vector<1x16xf32> to vector<64x16xf32>
    %22 = arith.addf %20, %21 : vector<64x16xf32>
    %23 = arith.truncf %22 : vector<64x16xf32> to vector<64x16xbf16>
    %c0_9 = arith.constant 0 : index
    %c0_10 = arith.constant 0 : index
    %24 = vector.load %arg4[%c0_9, %c0_10] : memref<64x16xbf16, #tpu.memory_space<vmem>>, vector<64x16xbf16>
    tpu.vector_store %arg4[%c0_9, %c0_10], %23 {strides = array<i32>} : memref<64x16xbf16, #tpu.memory_space<vmem>>, vector<64x16xbf16>,
    return
  }
  func.func @transform_0(%arg0: i32) -> (i32, i32) {
    %c0_i32 = arith.constant 0 : i32
    %c0_i32_0 = arith.constant 0 : i32
    return %arg0, %c0_i32 : i32, i32
  }
  func.func @transform_1(%arg0: i32) -> (i32, i32) {
    %c0_i32 = arith.constant 0 : i32
    %c0_i32_0 = arith.constant 0 : i32
    %c0_i32_1 = arith.constant 0 : i32
    return %c0_i32, %c0_i32_0 : i32, i32
  }
  func.func @transform_2(%arg0: i32) -> (i32, i32) {
    %c0_i32 = arith.constant 0 : i32
    %c0_i32_0 = arith.constant 0 : i32
    %c0_i32_1 = arith.constant 0 : i32
    return %c0_i32, %c0_i32_0 : i32, i32
  }
  func.func @transform_3(%arg0: i32) -> (i32, i32) {
    %c0_i32 = arith.constant 0 : i32
    %c0_i32_0 = arith.constant 0 : i32
    return %arg0, %c0_i32 : i32, i32
  }
}

module attributes {stable_mosaic.version = 11 : i64} {
  func.func @_spectral_mix_kernel(%arg0: i32, %arg1: memref<16x16xbf16, #tpu.memory_space<vmem>>, %arg2: memref<16x16xbf16, #tpu.memory_space<vmem>>, %arg3: memref<16x16xbf16, #tpu.memory_space<vmem>>, %arg4: memref<16x16xbf16, #tpu.memory_space<vmem>>, %arg5: memref<16x16xbf16, #tpu.memory_space<vmem>>, %arg6: memref<1x16xf32, #tpu.memory_space<vmem>>, %arg7: memref<1x16xf32, #tpu.memory_space<vmem>>, %arg8: memref<16x16xbf16, #tpu.memory_space<vmem>>, %arg9: memref<16x16xbf16, #tpu.memory_space<vmem>>, %arg10: memref<16x16xbf16, #tpu.memory_space<vmem>>, %arg11: memref<1x16xf32, #tpu.memory_space<vmem>>, %arg12: memref<1x16xf32, #tpu.memory_space<vmem>>, %arg13: memref<16x16xbf16, #tpu.memory_space<vmem>>, %arg14: memref<16x16xbf16, #tpu.memory_space<vmem>>) attributes {dimension_semantics = [#tpu.dimension_semantics<parallel>], iteration_bounds = array<i64: 5>, scalar_prefetch = 0 : i64, scratch_operands = 0 : i64, tpu.core_type = #tpu.core_type<tc>, window_params = [{transform_indices = @transform_0, window_bounds = array<i64: 16, 16>}, {transform_indices = @transform_1, window_bounds = array<i64: 16, 16>}, {pipeline_mode = #tpu.pipeline_mode<synchronous>, transform_indices = @transform_2, window_bounds = array<i64: 16, 16>}, {pipeline_mode = #tpu.pipeline_mode<synchronous>, transform_indices = @transform_3, window_bounds = array<i64: 16, 16>}, {pipeline_mode = #tpu.pipeline_mode<synchronous>, transform_indices = @transform_4, window_bounds = array<i64: 16, 16>}, {pipeline_mode = #tpu.pipeline_mode<synchronous>, transform_indices = @transform_5, window_bounds = array<i64: 1, 16>}, {pipeline_mode = #tpu.pipeline_mode<synchronous>, transform_indices = @transform_6, window_bounds = array<i64: 1, 16>}, {pipeline_mode = #tpu.pipeline_mode<synchronous>, transform_indices = @transform_7, window_bounds = array<i64: 16, 16>}, {pipeline_mode = #tpu.pipeline_mode<synchronous>, transform_indices = @transform_8, window_bounds = array<i64: 16, 16>}, {pipeline_mode = #tpu.pipeline_mode<synchronous>, transform_indices = @transform_9, window_bounds = array<i64: 16, 16>}, {pipeline_mode = #tpu.pipeline_mode<synchronous>, transform_indices = @transform_10, window_bounds = array<i64: 1, 16>}, {pipeline_mode = #tpu.pipeline_mode<synchronous>, transform_indices = @transform_11, window_bounds = array<i64: 1, 16>}, {transform_indices = @transform_12, window_bounds = array<i64: 16, 16>}, {transform_indices = @transform_13, window_bounds = array<i64: 16, 16>}]} {
    %c0 = arith.constant 0 : index
    %c0_0 = arith.constant 0 : index
    %0 = vector.load %arg1[%c0, %c0_0] : memref<16x16xbf16, #tpu.memory_space<vmem>>, vector<16x16xbf16>
    %c0_1 = arith.constant 0 : index
    %c0_2 = arith.constant 0 : index
    %1 = vector.load %arg2[%c0_1, %c0_2] : memref<16x16xbf16, #tpu.memory_space<vmem>>, vector<16x16xbf16>
    %2 = arith.addf %0, %1 : vector<16x16xbf16>
    %c0_3 = arith.constant 0 : index
    %c0_4 = arith.constant 0 : index
    %3 = vector.load %arg3[%c0_3, %c0_4] : memref<16x16xbf16, #tpu.memory_space<vmem>>, vector<16x16xbf16>
    %cst = arith.constant dense<0.000000e+00> : vector<16x16xf32>
    %4 = tpu.matmul %2, %3, %cst {dimension_numbers = #tpu.dot_dimension_numbers<[1], [0], [0], [1], [0, 0, 1, 1], [], []>} : vector<16x16xbf16>, vector<16x16xbf16>, vector<16x16xf32> -> vector<16x16xf32>
    %c0_5 = arith.constant 0 : index
    %c0_6 = arith.constant 0 : index
    %5 = vector.load %arg4[%c0_5, %c0_6] : memref<16x16xbf16, #tpu.memory_space<vmem>>, vector<16x16xbf16>
    %cst_7 = arith.constant dense<0.000000e+00> : vector<16x16xf32>
    %6 = tpu.matmul %0, %5, %cst_7 {dimension_numbers = #tpu.dot_dimension_numbers<[1], [0], [0], [1], [0, 0, 1, 1], [], []>} : vector<16x16xbf16>, vector<16x16xbf16>, vector<16x16xf32> -> vector<16x16xf32>
    %c0_8 = arith.constant 0 : index
    %c0_9 = arith.constant 0 : index
    %7 = vector.load %arg5[%c0_8, %c0_9] : memref<16x16xbf16, #tpu.memory_space<vmem>>, vector<16x16xbf16>
    %cst_10 = arith.constant dense<0.000000e+00> : vector<16x16xf32>
    %8 = tpu.matmul %1, %7, %cst_10 {dimension_numbers = #tpu.dot_dimension_numbers<[1], [0], [0], [1], [0, 0, 1, 1], [], []>} : vector<16x16xbf16>, vector<16x16xbf16>, vector<16x16xf32> -> vector<16x16xf32>
    %9 = arith.subf %4, %8 : vector<16x16xf32>
    %c0_11 = arith.constant 0 : index
    %c0_12 = arith.constant 0 : index
    %10 = vector.load %arg6[%c0_11, %c0_12] : memref<1x16xf32, #tpu.memory_space<vmem>>, vector<1x16xf32>
    %11 = vector.broadcast %10 : vector<1x16xf32> to vector<16x16xf32>
    %12 = arith.addf %9, %11 : vector<16x16xf32>
    %cst_13 = arith.constant 0.000000e+00 : f32
    %13 = vector.broadcast %cst_13 : f32 to vector<16x16xf32>
    %14 = arith.maximumf %12, %13 : vector<16x16xf32>
    %15 = arith.truncf %14 : vector<16x16xf32> to vector<16x16xbf16>
    %16 = arith.addf %4, %6 : vector<16x16xf32>
    %c0_14 = arith.constant 0 : index
    %c0_15 = arith.constant 0 : index
    %17 = vector.load %arg7[%c0_14, %c0_15] : memref<1x16xf32, #tpu.memory_space<vmem>>, vector<1x16xf32>
    %18 = vector.broadcast %17 : vector<1x16xf32> to vector<16x16xf32>
    %19 = arith.addf %16, %18 : vector<16x16xf32>
    %cst_16 = arith.constant 0.000000e+00 : f32
    %20 = vector.broadcast %cst_16 : f32 to vector<16x16xf32>
    %21 = arith.maximumf %19, %20 : vector<16x16xf32>
    %22 = arith.truncf %21 : vector<16x16xf32> to vector<16x16xbf16>
    %23 = arith.addf %15, %22 : vector<16x16xbf16>
    %c0_17 = arith.constant 0 : index
    %c0_18 = arith.constant 0 : index
    %24 = vector.load %arg8[%c0_17, %c0_18] : memref<16x16xbf16, #tpu.memory_space<vmem>>, vector<16x16xbf16>
    %cst_19 = arith.constant dense<0.000000e+00> : vector<16x16xf32>
    %25 = tpu.matmul %23, %24, %cst_19 {dimension_numbers = #tpu.dot_dimension_numbers<[1], [0], [0], [1], [0, 0, 1, 1], [], []>} : vector<16x16xbf16>, vector<16x16xbf16>, vector<16x16xf32> -> vector<16x16xf32>
    %c0_20 = arith.constant 0 : index
    %c0_21 = arith.constant 0 : index
    %26 = vector.load %arg9[%c0_20, %c0_21] : memref<16x16xbf16, #tpu.memory_space<vmem>>, vector<16x16xbf16>
    %cst_22 = arith.constant dense<0.000000e+00> : vector<16x16xf32>
    %27 = tpu.matmul %15, %26, %cst_22 {dimension_numbers = #tpu.dot_dimension_numbers<[1], [0], [0], [1], [0, 0, 1, 1], [], []>} : vector<16x16xbf16>, vector<16x16xbf16>, vector<16x16xf32> -> vector<16x16xf32>
    %c0_23 = arith.constant 0 : index
    %c0_24 = arith.constant 0 : index
    %28 = vector.load %arg10[%c0_23, %c0_24] : memref<16x16xbf16, #tpu.memory_space<vmem>>, vector<16x16xbf16>
    %cst_25 = arith.constant dense<0.000000e+00> : vector<16x16xf32>
    %29 = tpu.matmul %22, %28, %cst_25 {dimension_numbers = #tpu.dot_dimension_numbers<[1], [0], [0], [1], [0, 0, 1, 1], [], []>} : vector<16x16xbf16>, vector<16x16xbf16>, vector<16x16xf32> -> vector<16x16xf32>
    %30 = arith.subf %25, %29 : vector<16x16xf32>
    %c0_26 = arith.constant 0 : index
    %c0_27 = arith.constant 0 : index
    %31 = vector.load %arg11[%c0_26, %c0_27] : memref<1x16xf32, #tpu.memory_space<vmem>>, vector<1x16xf32>
    %32 = vector.broadcast %31 : vector<1x16xf32> to vector<16x16xf32>
    %33 = arith.addf %30, %32 : vector<16x16xf32>
    %cst_28 = arith.constant 0.00999999977 : f32
    %34 = vector.broadcast %cst_28 : f32 to vector<16x16xf32>
    %35 = arith.cmpf ogt, %33, %34 : vector<16x16xf32>
    %cst_29 = arith.constant 0.00999999977 : f32
    %36 = vector.broadcast %cst_29 : f32 to vector<16x16xf32>
    %37 = arith.subf %33, %36 : vector<16x16xf32>
    %cst_30 = arith.constant -0.00999999977 : f32
    %38 = vector.broadcast %cst_30 : f32 to vector<16x16xf32>
    %39 = arith.cmpf olt, %33, %38 : vector<16x16xf32>
    %cst_31 = arith.constant 0.00999999977 : f32
    %40 = vector.broadcast %cst_31 : f32 to vector<16x16xf32>
    %41 = arith.addf %33, %40 : vector<16x16xf32>
    %cst_32 = arith.constant 0.000000e+00 : f32
    %42 = vector.broadcast %cst_32 : f32 to vector<16x16xf32>
    %43 = arith.select %39, %41, %42 : vector<16x16xi1>, vector<16x16xf32>
    %44 = arith.select %35, %37, %43 : vector<16x16xi1>, vector<16x16xf32>
    %45 = arith.truncf %44 : vector<16x16xf32> to vector<16x16xbf16>
    %c0_33 = arith.constant 0 : index
    %c0_34 = arith.constant 0 : index
    %46 = vector.load %arg13[%c0_33, %c0_34] : memref<16x16xbf16, #tpu.memory_space<vmem>>, vector<16x16xbf16>
    tpu.vector_store %arg13[%c0_33, %c0_34], %45 {strides = array<i32>} : memref<16x16xbf16, #tpu.memory_space<vmem>>, vector<16x16xbf16>,
    %47 = arith.addf %25, %27 : vector<16x16xf32>
    %c0_35 = arith.constant 0 : index
    %c0_36 = arith.constant 0 : index
    %48 = vector.load %arg12[%c0_35, %c0_36] : memref<1x16xf32, #tpu.memory_space<vmem>>, vector<1x16xf32>
    %49 = vector.broadcast %48 : vector<1x16xf32> to vector<16x16xf32>
    %50 = arith.addf %47, %49 : vector<16x16xf32>
    %cst_37 = arith.constant 0.00999999977 : f32
    %51 = vector.broadcast %cst_37 : f32 to vector<16x16xf32>
    %52 = arith.cmpf ogt, %50, %51 : vector<16x16xf32>
    %cst_38 = arith.constant 0.00999999977 : f32
    %53 = vector.broadcast %cst_38 : f32 to vector<16x16xf32>
    %54 = arith.subf %50, %53 : vector<16x16xf32>
    %cst_39 = arith.constant -0.00999999977 : f32
    %55 = vector.broadcast %cst_39 : f32 to vector<16x16xf32>
    %56 = arith.cmpf olt, %50, %55 : vector<16x16xf32>
    %cst_40 = arith.constant 0.00999999977 : f32
    %57 = vector.broadcast %cst_40 : f32 to vector<16x16xf32>
    %58 = arith.addf %50, %57 : vector<16x16xf32>
    %cst_41 = arith.constant 0.000000e+00 : f32
    %59 = vector.broadcast %cst_41 : f32 to vector<16x16xf32>
    %60 = arith.select %56, %58, %59 : vector<16x16xi1>, vector<16x16xf32>
    %61 = arith.select %52, %54, %60 : vector<16x16xi1>, vector<16x16xf32>
    %62 = arith.truncf %61 : vector<16x16xf32> to vector<16x16xbf16>
    %c0_42 = arith.constant 0 : index
    %c0_43 = arith.constant 0 : index
    %63 = vector.load %arg14[%c0_42, %c0_43] : memref<16x16xbf16, #tpu.memory_space<vmem>>, vector<16x16xbf16>
    tpu.vector_store %arg14[%c0_42, %c0_43], %62 {strides = array<i32>} : memref<16x16xbf16, #tpu.memory_space<vmem>>, vector<16x16xbf16>,
    return
  }
  func.func @transform_0(%arg0: i32) -> (i32, i32) {
    %c0_i32 = arith.constant 0 : i32
    %c0_i32_0 = arith.constant 0 : i32
    return %arg0, %c0_i32 : i32, i32
  }
  func.func @transform_1(%arg0: i32) -> (i32, i32) {
    %c0_i32 = arith.constant 0 : i32
    %c0_i32_0 = arith.constant 0 : i32
    return %arg0, %c0_i32 : i32, i32
  }
  func.func @transform_2(%arg0: i32) -> (i32, i32) {
    %c0_i32 = arith.constant 0 : i32
    %c0_i32_0 = arith.constant 0 : i32
    %c0_i32_1 = arith.constant 0 : i32
    return %c0_i32, %c0_i32_0 : i32, i32
  }
  func.func @transform_3(%arg0: i32) -> (i32, i32) {
    %c0_i32 = arith.constant 0 : i32
    %c0_i32_0 = arith.constant 0 : i32
    %c0_i32_1 = arith.constant 0 : i32
    return %c0_i32, %c0_i32_0 : i32, i32
  }
  func.func @transform_4(%arg0: i32) -> (i32, i32) {
    %c0_i32 = arith.constant 0 : i32
    %c0_i32_0 = arith.constant 0 : i32
    %c0_i32_1 = arith.constant 0 : i32
    return %c0_i32, %c0_i32_0 : i32, i32
  }
  func.func @transform_5(%arg0: i32) -> (i32, i32) {
    %c0_i32 = arith.constant 0 : i32
    %c0_i32_0 = arith.constant 0 : i32
    %c0_i32_1 = arith.constant 0 : i32
    return %c0_i32, %c0_i32_0 : i32, i32
  }
  func.func @transform_6(%arg0: i32) -> (i32, i32) {
    %c0_i32 = arith.constant 0 : i32
    %c0_i32_0 = arith.constant 0 : i32
    %c0_i32_1 = arith.constant 0 : i32
    return %c0_i32, %c0_i32_0 : i32, i32
  }
  func.func @transform_7(%arg0: i32) -> (i32, i32) {
    %c0_i32 = arith.constant 0 : i32
    %c0_i32_0 = arith.constant 0 : i32
    %c0_i32_1 = arith.constant 0 : i32
    return %c0_i32, %c0_i32_0 : i32, i32
  }
  func.func @transform_8(%arg0: i32) -> (i32, i32) {
    %c0_i32 = arith.constant 0 : i32
    %c0_i32_0 = arith.constant 0 : i32
    %c0_i32_1 = arith.constant 0 : i32
    return %c0_i32, %c0_i32_0 : i32, i32
  }
  func.func @transform_9(%arg0: i32) -> (i32, i32) {
    %c0_i32 = arith.constant 0 : i32
    %c0_i32_0 = arith.constant 0 : i32
    %c0_i32_1 = arith.constant 0 : i32
    return %c0_i32, %c0_i32_0 : i32, i32
  }
  func.func @transform_10(%arg0: i32) -> (i32, i32) {
    %c0_i32 = arith.constant 0 : i32
    %c0_i32_0 = arith.constant 0 : i32
    %c0_i32_1 = arith.constant 0 : i32
    return %c0_i32, %c0_i32_0 : i32, i32
  }
  func.func @transform_11(%arg0: i32) -> (i32, i32) {
    %c0_i32 = arith.constant 0 : i32
    %c0_i32_0 = arith.constant 0 : i32
    %c0_i32_1 = arith.constant 0 : i32
    return %c0_i32, %c0_i32_0 : i32, i32
  }
  func.func @transform_12(%arg0: i32) -> (i32, i32) {
    %c0_i32 = arith.constant 0 : i32
    %c0_i32_0 = arith.constant 0 : i32
    return %arg0, %c0_i32 : i32, i32
  }
  func.func @transform_13(%arg0: i32) -> (i32, i32) {
    %c0_i32 = arith.constant 0 : i32
    %c0_i32_0 = arith.constant 0 : i32
    return %arg0, %c0_i32 : i32, i32
  }
}

module attributes {stable_mosaic.version = 11 : i64} {
  func.func @_ln_mlp_residual_kernel(%arg0: i32, %arg1: memref<64x16xf32, #tpu.memory_space<vmem>>, %arg2: memref<64x16xf32, #tpu.memory_space<vmem>>, %arg3: memref<1x16xf32, #tpu.memory_space<vmem>>, %arg4: memref<1x16xf32, #tpu.memory_space<vmem>>, %arg5: memref<16x64xbf16, #tpu.memory_space<vmem>>, %arg6: memref<1x64xf32, #tpu.memory_space<vmem>>, %arg7: memref<64x16xbf16, #tpu.memory_space<vmem>>, %arg8: memref<1x16xf32, #tpu.memory_space<vmem>>, %arg9: memref<64x16xf32, #tpu.memory_space<vmem>>) attributes {dimension_semantics = [#tpu.dimension_semantics<parallel>], iteration_bounds = array<i64: 2>, scalar_prefetch = 0 : i64, scratch_operands = 0 : i64, tpu.core_type = #tpu.core_type<tc>, window_params = [{transform_indices = @transform_0, window_bounds = array<i64: 64, 16>}, {transform_indices = @transform_1, window_bounds = array<i64: 64, 16>}, {pipeline_mode = #tpu.pipeline_mode<synchronous>, transform_indices = @transform_2, window_bounds = array<i64: 1, 16>}, {pipeline_mode = #tpu.pipeline_mode<synchronous>, transform_indices = @transform_3, window_bounds = array<i64: 1, 16>}, {pipeline_mode = #tpu.pipeline_mode<synchronous>, transform_indices = @transform_4, window_bounds = array<i64: 16, 64>}, {pipeline_mode = #tpu.pipeline_mode<synchronous>, transform_indices = @transform_5, window_bounds = array<i64: 1, 64>}, {pipeline_mode = #tpu.pipeline_mode<synchronous>, transform_indices = @transform_6, window_bounds = array<i64: 64, 16>}, {pipeline_mode = #tpu.pipeline_mode<synchronous>, transform_indices = @transform_7, window_bounds = array<i64: 1, 16>}, {transform_indices = @transform_8, window_bounds = array<i64: 64, 16>}]} {
    %c0 = arith.constant 0 : index
    %c0_0 = arith.constant 0 : index
    %0 = vector.load %arg1[%c0, %c0_0] : memref<64x16xf32, #tpu.memory_space<vmem>>, vector<64x16xf32>
    %c0_1 = arith.constant 0 : index
    %c0_2 = arith.constant 0 : index
    %1 = vector.load %arg3[%c0_1, %c0_2] : memref<1x16xf32, #tpu.memory_space<vmem>>, vector<1x16xf32>
    %c0_3 = arith.constant 0 : index
    %c0_4 = arith.constant 0 : index
    %2 = vector.load %arg4[%c0_3, %c0_4] : memref<1x16xf32, #tpu.memory_space<vmem>>, vector<1x16xf32>
    %cst = arith.constant dense<0.000000e+00> : vector<64xf32>
    %3 = vector.multi_reduction <add>, %0, %cst [1] : vector<64x16xf32> to vector<64xf32>
    %4 = vector.shape_cast %3 : vector<64xf32> to vector<64x1xf32>
    %cst_5 = arith.constant 1.600000e+01 : f32
    %5 = vector.broadcast %cst_5 : f32 to vector<64x1xf32>
    %6 = arith.divf %4, %5 : vector<64x1xf32>
    %7 = vector.broadcast %6 : vector<64x1xf32> to vector<64x16xf32>
    %8 = arith.subf %0, %7 : vector<64x16xf32>
    %9 = arith.mulf %8, %8 : vector<64x16xf32>
    %cst_6 = arith.constant dense<0.000000e+00> : vector<64xf32>
    %10 = vector.multi_reduction <add>, %9, %cst_6 [1] : vector<64x16xf32> to vector<64xf32>
    %11 = vector.shape_cast %10 : vector<64xf32> to vector<64x1xf32>
    %cst_7 = arith.constant 1.600000e+01 : f32
    %12 = vector.broadcast %cst_7 : f32 to vector<64x1xf32>
    %13 = arith.divf %11, %12 : vector<64x1xf32>
    %cst_8 = arith.constant 9.99999974E-6 : f32
    %14 = vector.broadcast %cst_8 : f32 to vector<64x1xf32>
    %15 = arith.addf %13, %14 : vector<64x1xf32>
    %16 = math.rsqrt %15 : vector<64x1xf32>
    %17 = vector.broadcast %16 : vector<64x1xf32> to vector<64x16xf32>
    %18 = arith.mulf %8, %17 : vector<64x16xf32>
    %19 = vector.broadcast %1 : vector<1x16xf32> to vector<64x16xf32>
    %20 = arith.mulf %18, %19 : vector<64x16xf32>
    %21 = vector.broadcast %2 : vector<1x16xf32> to vector<64x16xf32>
    %22 = arith.addf %20, %21 : vector<64x16xf32>
    %23 = arith.truncf %22 : vector<64x16xf32> to vector<64x16xbf16>
    %c0_9 = arith.constant 0 : index
    %c0_10 = arith.constant 0 : index
    %24 = vector.load %arg5[%c0_9, %c0_10] : memref<16x64xbf16, #tpu.memory_space<vmem>>, vector<16x64xbf16>
    %cst_11 = arith.constant dense<0.000000e+00> : vector<64x64xf32>
    %25 = tpu.matmul %23, %24, %cst_11 {dimension_numbers = #tpu.dot_dimension_numbers<[1], [0], [0], [1], [0, 0, 1, 1], [], []>} : vector<64x16xbf16>, vector<16x64xbf16>, vector<64x64xf32> -> vector<64x64xf32>
    %c0_12 = arith.constant 0 : index
    %c0_13 = arith.constant 0 : index
    %26 = vector.load %arg6[%c0_12, %c0_13] : memref<1x64xf32, #tpu.memory_space<vmem>>, vector<1x64xf32>
    %27 = vector.broadcast %26 : vector<1x64xf32> to vector<64x64xf32>
    %28 = arith.addf %25, %27 : vector<64x64xf32>
    %cst_14 = arith.constant 5.000000e-01 : f32
    %29 = vector.broadcast %cst_14 : f32 to vector<64x64xf32>
    %30 = arith.mulf %29, %28 : vector<64x64xf32>
    %cst_15 = arith.constant 0.707106769 : f32
    %31 = vector.broadcast %cst_15 : f32 to vector<64x64xf32>
    %32 = arith.mulf %28, %31 : vector<64x64xf32>
    %33 = math.erf %32 : vector<64x64xf32>
    %cst_16 = arith.constant 1.000000e+00 : f32
    %34 = vector.broadcast %cst_16 : f32 to vector<64x64xf32>
    %35 = arith.addf %34, %33 : vector<64x64xf32>
    %36 = arith.mulf %30, %35 : vector<64x64xf32>
    %37 = arith.truncf %36 : vector<64x64xf32> to vector<64x64xbf16>
    %c0_17 = arith.constant 0 : index
    %c0_18 = arith.constant 0 : index
    %38 = vector.load %arg7[%c0_17, %c0_18] : memref<64x16xbf16, #tpu.memory_space<vmem>>, vector<64x16xbf16>
    %cst_19 = arith.constant dense<0.000000e+00> : vector<64x16xf32>
    %39 = tpu.matmul %37, %38, %cst_19 {dimension_numbers = #tpu.dot_dimension_numbers<[1], [0], [0], [1], [0, 0, 1, 1], [], []>} : vector<64x64xbf16>, vector<64x16xbf16>, vector<64x16xf32> -> vector<64x16xf32>
    %c0_20 = arith.constant 0 : index
    %c0_21 = arith.constant 0 : index
    %40 = vector.load %arg8[%c0_20, %c0_21] : memref<1x16xf32, #tpu.memory_space<vmem>>, vector<1x16xf32>
    %41 = vector.broadcast %40 : vector<1x16xf32> to vector<64x16xf32>
    %42 = arith.addf %39, %41 : vector<64x16xf32>
    %c0_22 = arith.constant 0 : index
    %c0_23 = arith.constant 0 : index
    %43 = vector.load %arg2[%c0_22, %c0_23] : memref<64x16xf32, #tpu.memory_space<vmem>>, vector<64x16xf32>
    %44 = arith.addf %42, %43 : vector<64x16xf32>
    %c0_24 = arith.constant 0 : index
    %c0_25 = arith.constant 0 : index
    %45 = vector.load %arg9[%c0_24, %c0_25] : memref<64x16xf32, #tpu.memory_space<vmem>>, vector<64x16xf32>
    tpu.vector_store %arg9[%c0_24, %c0_25], %44 {strides = array<i32>} : memref<64x16xf32, #tpu.memory_space<vmem>>, vector<64x16xf32>,
    return
  }
  func.func @transform_0(%arg0: i32) -> (i32, i32) {
    %c0_i32 = arith.constant 0 : i32
    %c0_i32_0 = arith.constant 0 : i32
    return %arg0, %c0_i32 : i32, i32
  }
  func.func @transform_1(%arg0: i32) -> (i32, i32) {
    %c0_i32 = arith.constant 0 : i32
    %c0_i32_0 = arith.constant 0 : i32
    return %arg0, %c0_i32 : i32, i32
  }
  func.func @transform_2(%arg0: i32) -> (i32, i32) {
    %c0_i32 = arith.constant 0 : i32
    %c0_i32_0 = arith.constant 0 : i32
    %c0_i32_1 = arith.constant 0 : i32
    return %c0_i32, %c0_i32_0 : i32, i32
  }
  func.func @transform_3(%arg0: i32) -> (i32, i32) {
    %c0_i32 = arith.constant 0 : i32
    %c0_i32_0 = arith.constant 0 : i32
    %c0_i32_1 = arith.constant 0 : i32
    return %c0_i32, %c0_i32_0 : i32, i32
  }
  func.func @transform_4(%arg0: i32) -> (i32, i32) {
    %c0_i32 = arith.constant 0 : i32
    %c0_i32_0 = arith.constant 0 : i32
    %c0_i32_1 = arith.constant 0 : i32
    return %c0_i32, %c0_i32_0 : i32, i32
  }
  func.func @transform_5(%arg0: i32) -> (i32, i32) {
    %c0_i32 = arith.constant 0 : i32
    %c0_i32_0 = arith.constant 0 : i32
    %c0_i32_1 = arith.constant 0 : i32
    return %c0_i32, %c0_i32_0 : i32, i32
  }
  func.func @transform_6(%arg0: i32) -> (i32, i32) {
    %c0_i32 = arith.constant 0 : i32
    %c0_i32_0 = arith.constant 0 : i32
    %c0_i32_1 = arith.constant 0 : i32
    return %c0_i32, %c0_i32_0 : i32, i32
  }
  func.func @transform_7(%arg0: i32) -> (i32, i32) {
    %c0_i32 = arith.constant 0 : i32
    %c0_i32_0 = arith.constant 0 : i32
    %c0_i32_1 = arith.constant 0 : i32
    return %c0_i32, %c0_i32_0 : i32, i32
  }
  func.func @transform_8(%arg0: i32) -> (i32, i32) {
    %c0_i32 = arith.constant 0 : i32
    %c0_i32_0 = arith.constant 0 : i32
    return %arg0, %c0_i32 : i32, i32
  }
}

</mosaic_0001>

<llo_original>
// kernel: fourier_block_forward.3
$region0: #{fourier_block_forward.3}
  #allocation0 [shape = 'u32[]', space=smem, size = 0x4, offset = 0x4, fixed_abs, tag = 'smem constant byte address 0x4 - core index']
  #allocation1 [shape = 'u32[144,128]{1,0:T(1,128)}', space=vmem, size = 0x12000, scoped, tag = 'internal scratch']
  %s0 = inlined_call_operand.vmem [shape: f32[128,16], index: 0, kind: input, shape index: {}]
  %s1 = inlined_call_operand.vmem [shape: f32[1,16], index: 1, kind: input, shape index: {}]
  %s2 = inlined_call_operand.vmem [shape: f32[1,16], index: 2, kind: input, shape index: {}]
  %s3 = inlined_call_operand.vmem [shape: bf16[128,16], index: 3, kind: output, shape index: {}]
  %s4 = sld [smem:[#allocation0]]
  $region45: #{fourier_block_forward.3} parent=0
    _
  %s6 = ssub.s32 1, %s4
  %s7 = scalar_select 0, %s6, %s4
  loop: start=0, step=1, limit=4
  $region2: #{fourier_block_forward.3} parent=0 // loop_pre_header
    _
  $region3: #{fourier_block_forward.3} parent=0 // loop_header
    %s9 = sphi 0, %s13
    %p10 = scmp.ge.s32.totalorder %s9, 4
    %s19 = sphi 0, %s21
    %s22 = sphi 0, %s19
    %s23 = sphi 0, %s22
    %s39 = sphi 0, %s23
    %s43 = sphi 0, %s43
    %s45 = sphi 0, %s43
    %s46 = sphi 0, %s45
    %s60 = sphi 0, %s46
    %s64 = sphi 0, %s64
    %s66 = sphi 0, %s64
    %s67 = sphi 0, %s66
    %s81 = sphi 0, %s67
    %s87 = sphi 0, %s89
    %s90 = sphi 0, %s87
    %s91 = sphi 0, %s90
    %s107 = sphi 0, %s91
  $region4: #{fourier_block_forward.3} parent=0 // loop_header_branch
    %12 = sbr.rel (%p10) target = $region8
  $region5: #{fourier_block_forward.3} parent=0 // loop_body
    %s14 = ssub.s32 %s9, 1
    %s15 = ssub.s32 %s9, 2
    %s16 = sadd.s32 %s9, 1
    %s17 = ssub.s32 %s9, %s16
    %p18 = scmp.eq.s32.totalorder %s17, 0
    %s20 = sadd.s32 %s19, 1
    %s21 = scalar_select %p18, %s19, %s20
    %p24 = pneg %p18
    %p25 = scmp.eq.s32.totalorder %s9, 1
    %p26 = por %p24, %p25
    %p27 = scmp.ne.s32.totalorder %s19, %s22
    %p28 = scmp.eq.s32.totalorder %s9, 0
    %p29 = por %p27, %p28
    %p30 = scmp.ne.s32.totalorder %s19, %s22
    %p31 = scmp.eq.s32.totalorder %s14, 1
    %p32 = por %p30, %p31
    %p33 = scmp.ne.s32.totalorder %s22, %s23
    %p34 = scmp.eq.s32.totalorder %s14, 0
    %p35 = por %p33, %p34
    %p36 = scmp.ne.s32.totalorder %s22, %s23
    %p37 = scmp.eq.s32.totalorder %s15, 1
    %p38 = por %p36, %p37
    %p40 = scmp.ne.s32.totalorder %s23, %s39
    %p41 = scmp.eq.s32.totalorder %s15, 0
    %p42 = por %p40, %p41
    %s44 = sadd.s32 %s43, 1
    %p47 = scmp.eq.s32.totalorder %s9, 1
    %p48 = scmp.ne.s32.totalorder %s43, %s45
    %p49 = scmp.eq.s32.totalorder %s9, 0
    %p50 = por %p48, %p49
    %p51 = scmp.ne.s32.totalorder %s43, %s45
    %p52 = scmp.eq.s32.totalorder %s14, 1
    %p53 = por %p51, %p52
    %p54 = scmp.ne.s32.totalorder %s45, %s46
    %p55 = scmp.eq.s32.totalorder %s14, 0
    %p56 = por %p54, %p55
    %p57 = scmp.ne.s32.totalorder %s45, %s46
    %p58 = scmp.eq.s32.totalorder %s15, 1
    %p59 = por %p57, %p58
    %p61 = scmp.ne.s32.totalorder %s46, %s60
    %p62 = scmp.eq.s32.totalorder %s15, 0
    %p63 = por %p61, %p62
    %s65 = sadd.s32 %s64, 1
    %p68 = scmp.eq.s32.totalorder %s9, 1
    %p69 = scmp.ne.s32.totalorder %s64, %s66
    %p70 = scmp.eq.s32.totalorder %s9, 0
    %p71 = por %p69, %p70
    %p72 = scmp.ne.s32.totalorder %s64, %s66
    %p73 = scmp.eq.s32.totalorder %s14, 1
    %p74 = por %p72, %p73
    %p75 = scmp.ne.s32.totalorder %s66, %s67
    %p76 = scmp.eq.s32.totalorder %s14, 0
    %p77 = por %p75, %p76
    %p78 = scmp.ne.s32.totalorder %s66, %s67
    %p79 = scmp.eq.s32.totalorder %s15, 1
    %p80 = por %p78, %p79
    %p82 = scmp.ne.s32.totalorder %s67, %s81
    %p83 = scmp.eq.s32.totalorder %s15, 0
    %p84 = por %p82, %p83
    %s85 = ssub.s32 %s9, %s16
    %p86 = scmp.eq.s32.totalorder %s85, 0
    %s88 = sadd.s32 %s87, 1
    %s89 = scalar_select %p86, %s87, %s88
    %p92 = pneg %p86
    %p93 = scmp.eq.s32.totalorder %s9, 1
    %p94 = por %p92, %p93
    %p95 = scmp.ne.s32.totalorder %s87, %s90
    %p96 = scmp.eq.s32.totalorder %s9, 0
    %p97 = por %p95, %p96
    %p98 = scmp.ne.s32.totalorder %s87, %s90
    %p99 = scmp.eq.s32.totalorder %s14, 1
    %p100 = por %p98, %p99
    %p101 = scmp.ne.s32.totalorder %s90, %s91
    %p102 = scmp.eq.s32.totalorder %s14, 0
    %p103 = por %p101, %p102
    %p104 = scmp.ne.s32.totalorder %s90, %s91
    %p105 = scmp.eq.s32.totalorder %s15, 1
    %p106 = por %p104, %p105
    %p108 = scmp.ne.s32.totalorder %s91, %s107
    %p109 = scmp.eq.s32.totalorder %s15, 0
    %p110 = por %p108, %p109
    %p111 = scmp.le.s32.totalorder 1, %s9
    %p112 = scmp.lt.s32.totalorder %s9, 3
    %p113 = pnand %p111, %p112
    %p114 = pneg %p113
    // Predicated region
    $region9: #{fourier_block_forward.3} parent=5 // pred_check
      _
    $region10: #{fourier_block_forward.3} parent=5 // pred_check_branch
      %116 = sbr.rel (%p113) target = $region12
    $region11: #{fourier_block_forward.3} parent=5 // pred_region
      %s117 = ssub.s32 %s9, 1
      // Predicated region
      $region13: #{fourier_block_forward.3} parent=11 // pred_check
        %p118 = pneg %p56
      $region14: #{fourier_block_forward.3} parent=11 // pred_check_branch
        %120 = sbr.rel (%p118) target = $region16
      $region15: #{fourier_block_forward.3} parent=11 // pred_region
        _
      $region16: #{fourier_block_forward.3} parent=11 // pred_fallthru
        _
      // Predicated region
      $region17: #{fourier_block_forward.3} parent=11 // pred_check
        %p121 = pneg %p77
      $region18: #{fourier_block_forward.3} parent=11 // pred_check_branch
        %123 = sbr.rel (%p121) target = $region20
      $region19: #{fourier_block_forward.3} parent=11 // pred_region
        _
      $region20: #{fourier_block_forward.3} parent=11 // pred_fallthru
        _
    $region12: #{fourier_block_forward.3} parent=5 // pred_fallthru
      _
    %p124 = scmp.lt.s32.totalorder %s9, 2
    // Predicated region
    $region21: #{fourier_block_forward.3} parent=5 // pred_check
      %p125 = pneg %p124
    $region22: #{fourier_block_forward.3} parent=5 // pred_check_branch
      %127 = sbr.rel (%p125) target = $region24
    $region23: #{fourier_block_forward.3} parent=5 // pred_region
      // Predicated region
      $region25: #{fourier_block_forward.3} parent=23 // pred_check
        %p128 = pneg %p29
      $region26: #{fourier_block_forward.3} parent=23 // pred_check_branch
        %130 = sbr.rel (%p128) target = $region28
      $region27: #{fourier_block_forward.3} parent=23 // pred_region
        %s131 = smul.u32 8, %s9
        %p132 = scmp.lt.s32.totalorder %s131, 15
        %s133 = scalar_select %p132, %s131, 15
        %s134 = smul.addr %s133, 8
        %s135 = scalar_lea.vmem %s0, %s134
        %s136 = smul.u32 8, %s9
      $region28: #{fourier_block_forward.3} parent=23 // pred_fallthru
        _
    $region24: #{fourier_block_forward.3} parent=5 // pred_fallthru
      _
    %p137 = scmp.le.s32.totalorder 1, %s9
    %p138 = scmp.lt.s32.totalorder %s9, 3
    %p139 = pnand %p137, %p138
    %p140 = pneg %p139
    // Predicated region
    $region29: #{fourier_block_forward.3} parent=5 // pred_check
      _
    $region30: #{fourier_block_forward.3} parent=5 // pred_check_branch
      %142 = sbr.rel (%p139) target = $region32
    $region31: #{fourier_block_forward.3} parent=5 // pred_region
      %s143 = ssub.s32 %s9, 1
      %s144 = smul.u32 8, %s14
      %p145 = scmp.lt.s32.totalorder %s144, 15
      %s146 = scalar_select %p145, %s144, 15
      %s147 = smul.addr %s146, 8
      %s148 = scalar_lea.vmem %s0, %s147
      %p149 = pneg %p35
      %p150 = pneg %p32
      %p151 = pneg %p56
      %p152 = pneg %p53
      %p153 = pneg %p77
      %p154 = pneg %p74
      %p155 = pneg %p103
      %p156 = pneg %p100
      %s157 = smul.u32 8, %s14
      %p158 = scmp.lt.s32.totalorder %s157, 15
      %s159 = scalar_select %p158, %s157, 15
      %s160 = smul.addr %s159, 4
      %s161 = scalar_lea.vmem %s3, %s160
      %s162 = smul.u32 8, %s14
      %p163 = scmp.lt.s32.totalorder %s162, 15
      %s164 = scalar_select %p163, %s162, 15
      %s165 = smul.addr %s164, 8
      %s166 = scalar_lea.vmem %s0, %s165
      %s167 = smul.u32 8, %s14
      %s168 = smul.u32 8, %s14
      %p169 = scmp.lt.s32.totalorder %s168, 15
      %s170 = scalar_select %p169, %s168, 15
      %s171 = smul.addr %s170, 4
      %s172 = scalar_lea.vmem %s3, %s171
      %s173 = smul.u32 8, %s14
      %v174 = vld [vmem:[%s166] sm:$0xff]
      %v175 = vld [vmem:[%s166 + $0x8] sm:$0xff]
      %v176 = vld [vmem:[%s166 + $0x10] sm:$0xff]
      %v177 = vld [vmem:[%s166 + $0x18] sm:$0xff]
      %v178 = vld [vmem:[%s166 + $0x20] sm:$0xff]
      %v179 = vld [vmem:[%s166 + $0x28] sm:$0xff]
      %v180 = vld [vmem:[%s166 + $0x30] sm:$0xff]
      %v181 = vld [vmem:[%s166 + $0x38] sm:$0xff]
      %v182 = vld [vmem:[%s1] sm:$0x1]
      %v183 = vld [vmem:[%s2] sm:$0x1]
      %vm184 = vcmask 130048
      %v185 = vsel %vm184, %v174, 0.0
      %186 = vadd.xlane.f32.xlu0 %v185
      %v187 = vpop.xlane.xlu0 %186
      %v188 = vsel %vm184, %v175, 0.0
      %189 = vadd.xlane.f32.xlu0 %v188
      %v190 = vpop.xlane.xlu0 %189
      %v191 = vsel %vm184, %v176, 0.0
      %192 = vadd.xlane.f32.xlu0 %v191
      %v193 = vpop.xlane.xlu0 %192
      %v194 = vsel %vm184, %v177, 0.0
      %195 = vadd.xlane.f32.xlu0 %v194
      %v196 = vpop.xlane.xlu0 %195
      %v197 = vsel %vm184, %v178, 0.0
      %198 = vadd.xlane.f32.xlu0 %v197
      %v199 = vpop.xlane.xlu0 %198
      %v200 = vsel %vm184, %v179, 0.0
      %201 = vadd.xlane.f32.xlu0 %v200
      %v202 = vpop.xlane.xlu0 %201
      %v203 = vsel %vm184, %v180, 0.0
      %204 = vadd.xlane.f32.xlu0 %v203
      %v205 = vpop.xlane.xlu0 %204
      %v206 = vsel %vm184, %v181, 0.0
      %207 = vadd.xlane.f32.xlu0 %v206
      %v208 = vpop.xlane.xlu0 %207
      %v209 = vrcp.pop 16.0
      %v210 = vmul.f32 %v187, %v209
      %v211 = vmul.f32 %v190, %v209
      %v212 = vmul.f32 %v193, %v209
      %v213 = vmul.f32 %v196, %v209
      %v214 = vmul.f32 %v199, %v209
      %v215 = vmul.f32 %v202, %v209
      %v216 = vmul.f32 %v205, %v209
      %v217 = vmul.f32 %v208, %v209
      %v218 = vsub.f32 %v174, %v210
      %v219 = vsub.f32 %v175, %v211
      %v220 = vsub.f32 %v176, %v212
      %v221 = vsub.f32 %v177, %v213
      %v222 = vsub.f32 %v178, %v214
      %v223 = vsub.f32 %v179, %v215
      %v224 = vsub.f32 %v180, %v216
      %v225 = vsub.f32 %v181, %v217
      %v226 = vmul.f32 %v218, %v218
      %v227 = vmul.f32 %v219, %v219
      %v228 = vmul.f32 %v220, %v220
      %v229 = vmul.f32 %v221, %v221
      %v230 = vmul.f32 %v222, %v222
      %v231 = vmul.f32 %v223, %v223
      %v232 = vmul.f32 %v224, %v224
      %v233 = vmul.f32 %v225, %v225
      %v234 = vsel %vm184, %v226, 0.0
      %235 = vadd.xlane.f32.xlu0 %v234
      %v236 = vpop.xlane.xlu0 %235
      %v237 = vsel %vm184, %v227, 0.0
      %238 = vadd.xlane.f32.xlu0 %v237
      %v239 = vpop.xlane.xlu0 %238
      %v240 = vsel %vm184, %v228, 0.0
      %241 = vadd.xlane.f32.xlu0 %v240
      %v242 = vpop.xlane.xlu0 %241
      %v243 = vsel %vm184, %v229, 0.0
      %244 = vadd.xlane.f32.xlu0 %v243
      %v245 = vpop.xlane.xlu0 %244
      %v246 = vsel %vm184, %v230, 0.0
      %247 = vadd.xlane.f32.xlu0 %v246
      %v248 = vpop.xlane.xlu0 %247
      %v249 = vsel %vm184, %v231, 0.0
      %250 = vadd.xlane.f32.xlu0 %v249
      %v251 = vpop.xlane.xlu0 %250
      %v252 = vsel %vm184, %v232, 0.0
      %253 = vadd.xlane.f32.xlu0 %v252
      %v254 = vpop.xlane.xlu0 %253
      %v255 = vsel %vm184, %v233, 0.0
      %256 = vadd.xlane.f32.xlu0 %v255
      %v257 = vpop.xlane.xlu0 %256
      %v258 = vmul.f32 %v236, %v209
      %v259 = vmul.f32 %v239, %v209
      %v260 = vmul.f32 %v242, %v209
      %v261 = vmul.f32 %v245, %v209
      %v262 = vmul.f32 %v248, %v209
      %v263 = vmul.f32 %v251, %v209
      %v264 = vmul.f32 %v254, %v209
      %v265 = vmul.f32 %v257, %v209
      %v266 = vadd.f32 %v258, 1e-05
      %v267 = vadd.f32 %v259, 1e-05
      %v268 = vadd.f32 %v260, 1e-05
      %v269 = vadd.f32 %v261, 1e-05
      %v270 = vadd.f32 %v262, 1e-05
      %v271 = vadd.f32 %v263, 1e-05
      %v272 = vadd.f32 %v264, 1e-05
      %v273 = vadd.f32 %v265, 1e-05
      %v274 = vrsqrt.pop %v266
      %v275 = vrsqrt.pop %v267
      %v276 = vrsqrt.pop %v268
      %v277 = vrsqrt.pop %v269
      %v278 = vrsqrt.pop %v270
      %v279 = vrsqrt.pop %v271
      %v280 = vrsqrt.pop %v272
      %v281 = vrsqrt.pop %v273
      %v282 = vmul.f32 %v218, %v274
      %v283 = vmul.f32 %v219, %v275
      %v284 = vmul.f32 %v220, %v276
      %v285 = vmul.f32 %v221, %v277
      %v286 = vmul.f32 %v222, %v278
      %v287 = vmul.f32 %v223, %v279
      %v288 = vmul.f32 %v224, %v280
      %v289 = vmul.f32 %v225, %v281
      %v291 = vlaneseq
      %v292 = vshrl.u32 %v291, 7
      %v293 = vsub.s32 0, %v292
      %v294 = vrot.slane %v182, %v293
      %v296 = vmul.f32 %v282, %v294
      %v297 = vmul.f32 %v283, %v294
      %v298 = vmul.f32 %v284, %v294
      %v299 = vmul.f32 %v285, %v294
      %v300 = vmul.f32 %v286, %v294
      %v301 = vmul.f32 %v287, %v294
      %v302 = vmul.f32 %v288, %v294
      %v303 = vmul.f32 %v289, %v294
      %v305 = vlaneseq
      %v306 = vshrl.u32 %v305, 7
      %v307 = vsub.s32 0, %v306
      %v308 = vrot.slane %v183, %v307
      %v310 = vadd.f32 %v296, %v308
      %v311 = vadd.f32 %v297, %v308
      %v312 = vadd.f32 %v298, %v308
      %v313 = vadd.f32 %v299, %v308
      %v314 = vadd.f32 %v300, %v308
      %v315 = vadd.f32 %v301, %v308
      %v316 = vadd.f32 %v302, %v308
      %v317 = vadd.f32 %v303, %v308
      %v318 = vpack.c.bf16 %v311, %v310
      %v319 = vpack.c.bf16 %v313, %v312
      %v320 = vpack.c.bf16 %v315, %v314
      %v321 = vpack.c.bf16 %v317, %v316
      %v326 = vunpack.c.l.b16 %v318
      %v327 = vunpack.c.h.b16 %v318
      %v328 = vunpack.c.l.b16 %v319
      %v329 = vunpack.c.h.b16 %v319
      %v330 = vunpack.c.l.b16 %v320
      %v331 = vunpack.c.h.b16 %v320
      %v332 = vunpack.c.l.b16 %v321
      %v333 = vunpack.c.h.b16 %v321
      %v334 = vpack.c.b16 %v326, %v326
      %v335 = vpack.c.b16 %v327, %v327
      %v336 = vpack.c.b16 %v328, %v328
      %v337 = vpack.c.b16 %v329, %v329
      %v338 = vpack.c.b16 %v330, %v330
      %v339 = vpack.c.b16 %v331, %v331
      %v340 = vpack.c.b16 %v332, %v332
      %v341 = vpack.c.b16 %v333, %v333
      %vm350 = vcmask 125952
      %351 = vst.msk [vmem:[%s172] sm:$0xf] %vm350, %v334
      %352 = vst.msk [vmem:[%s172 + $0x4] sm:$0xf] %vm350, %v335
      %353 = vst.msk [vmem:[%s172 + $0x8] sm:$0xf] %vm350, %v336
      %354 = vst.msk [vmem:[%s172 + $0xc] sm:$0xf] %vm350, %v337
      %355 = vst.msk [vmem:[%s172 + $0x10] sm:$0xf] %vm350, %v338
      %356 = vst.msk [vmem:[%s172 + $0x14] sm:$0xf] %vm350, %v339
      %357 = vst.msk [vmem:[%s172 + $0x18] sm:$0xf] %vm350, %v340
      %358 = vst.msk [vmem:[%s172 + $0x1c] sm:$0xf] %vm350, %v341
      %s359 = smul.u32 8, %s14
      %p360 = scmp.lt.s32.totalorder %s359, 15
      %s361 = scalar_select %p360, %s359, 15
      %s362 = smul.addr %s361, 4
      %s363 = scalar_lea.vmem %s3, %s362
      // Predicated region
      $region33: #{fourier_block_forward.3} parent=31 // pred_check
        %p364 = pneg %p100
      $region34: #{fourier_block_forward.3} parent=31 // pred_check_branch
        %366 = sbr.rel (%p364) target = $region36
      $region35: #{fourier_block_forward.3} parent=31 // pred_region
        %s367 = smul.u32 8, %s14
      $region36: #{fourier_block_forward.3} parent=31 // pred_fallthru
        _
    $region32: #{fourier_block_forward.3} parent=5 // pred_fallthru
      _
    %p368 = scmp.le.s32.totalorder 2, %s9
    // Predicated region
    $region37: #{fourier_block_forward.3} parent=5 // pred_check
      %p369 = pneg %p368
    $region38: #{fourier_block_forward.3} parent=5 // pred_check_branch
      %371 = sbr.rel (%p369) target = $region40
    $region39: #{fourier_block_forward.3} parent=5 // pred_region
      %s372 = ssub.s32 %s9, 2
      // Predicated region
      $region41: #{fourier_block_forward.3} parent=39 // pred_check
        %p373 = pneg %p106
      $region42: #{fourier_block_forward.3} parent=39 // pred_check_branch
        %375 = sbr.rel (%p373) target = $region44
      $region43: #{fourier_block_forward.3} parent=39 // pred_region
        %s376 = smul.u32 8, %s15
        %p377 = scmp.lt.s32.totalorder %s376, 15
        %s378 = scalar_select %p377, %s376, 15
        %s379 = smul.addr %s378, 4
        %s380 = scalar_lea.vmem %s3, %s379
      $region44: #{fourier_block_forward.3} parent=39 // pred_fallthru
        _
    $region40: #{fourier_block_forward.3} parent=5 // pred_fallthru
      _
  $region6: #{fourier_block_forward.3} parent=0 // loop_footer
    %s13 = sadd.s32 1, %s9
  $region7: #{fourier_block_forward.3} parent=0 // loop_footer_branch
    %8 = sbr.rel target = $region3
  $region8: #{fourier_block_forward.3} parent=0 // loop_exit
    _

// kernel: reverse.1
$region0: #{reverse.1}
  #allocation0 [shape = 's32[1]{0}', space=sflag, size = 0x4, scoped, tag = 'scoped memory for reverse.1']
  %s0 = inlined_call_operand.vmem [shape: f32[2,16,8,3], index: 0, kind: input, shape index: {}]
  %s1 = inlined_call_operand.vmem [shape: f32[2,16,8,3], index: 1, kind: output, shape index: {}]
  %s2 = scalar_lea.vmem %s0, 16
  %v3 = vld [vmem:[%s2] sm:$0xff]
  %4 = vst [vmem:[%s1] sm:$0xff] %v3
  %s5 = scalar_lea.vmem %s0, 40
  %v6 = vld [vmem:[%s5] sm:$0xff]
  %s7 = scalar_lea.vmem %s1, 24
  %8 = vst [vmem:[%s7] sm:$0xff] %v6
  %s9 = scalar_lea.vmem %s0, 8
  %v10 = vld [vmem:[%s9] sm:$0xff]
  %s11 = scalar_lea.vmem %s1, 8
  %12 = vst [vmem:[%s11] sm:$0xff] %v10
  %s13 = scalar_lea.vmem %s0, 32
  %v14 = vld [vmem:[%s13] sm:$0xff]
  %s15 = scalar_lea.vmem %s1, 32
  %16 = vst [vmem:[%s15] sm:$0xff] %v14
  %v17 = vld [vmem:[%s0] sm:$0xff]
  %s18 = scalar_lea.vmem %s1, 16
  %19 = vst [vmem:[%s18] sm:$0xff] %v17
  %s20 = scalar_lea.vmem %s0, 24
  %v21 = vld [vmem:[%s20] sm:$0xff]
  %s22 = scalar_lea.vmem %s1, 40
  %23 = vst [vmem:[%s22] sm:$0xff] %v21

// kernel: fourier_block_forward.4
$region0: #{fourier_block_forward.4}
  #allocation0 [shape = 'u32[]', space=smem, size = 0x4, offset = 0x4, fixed_abs, tag = 'smem constant byte address 0x4 - core index']
  #allocation1 [shape = 'u32[144,128]{1,0:T(1,128)}', space=vmem, size = 0x12000, scoped, tag = 'internal scratch']
  %s0 = inlined_call_operand.vmem [shape: bf16[80,16], index: 0, kind: input, shape index: {}]
  %s1 = inlined_call_operand.vmem [shape: bf16[80,16], index: 1, kind: input, shape index: {}]
  %s2 = inlined_call_operand.vmem [shape: bf16[16,16], index: 2, kind: input, shape index: {}]
  %s3 = inlined_call_operand.vmem [shape: bf16[16,16], index: 3, kind: input, shape index: {}]
  %s4 = inlined_call_operand.vmem [shape: bf16[16,16], index: 4, kind: input, shape index: {}]
  %s5 = inlined_call_operand.vmem [shape: f32[1,16], index: 5, kind: input, shape index: {}]
  %s6 = inlined_call_operand.vmem [shape: f32[1,16], index: 6, kind: input, shape index: {}]
  %s7 = inlined_call_operand.vmem [shape: bf16[16,16], index: 7, kind: input, shape index: {}]
  %s8 = inlined_call_operand.vmem [shape: bf16[16,16], index: 8, kind: input, shape index: {}]
  %s9 = inlined_call_operand.vmem [shape: bf16[16,16], index: 9, kind: input, shape index: {}]
  %s10 = inlined_call_operand.vmem [shape: f32[1,16], index: 10, kind: input, shape index: {}]
  %s11 = inlined_call_operand.vmem [shape: f32[1,16], index: 11, kind: input, shape index: {}]
  %s12 = inlined_call_operand.vmem [shape: bf16[80,16], index: 12, kind: output, shape index: {0}]
  %s13 = inlined_call_operand.vmem [shape: bf16[80,16], index: 13, kind: output, shape index: {1}]
  %14 = xla_tuple %s12, %s13
  %s15 = sld [smem:[#allocation0]]
  $region89: #{fourier_block_forward.4} parent=0
    _
  %s17 = ssub.s32 1, %s15
  %s18 = scalar_select 0, %s17, %s15
  loop: start=0, step=1, limit=7
  $region2: #{fourier_block_forward.4} parent=0 // loop_pre_header
    _
  $region3: #{fourier_block_forward.4} parent=0 // loop_header
    %s20 = sphi 0, %s24
    %p21 = scmp.ge.s32.totalorder %s20, 7
    %s30 = sphi 0, %s32
    %s33 = sphi 0, %s30
    %s34 = sphi 0, %s33
    %s50 = sphi 0, %s34
    %s56 = sphi 0, %s58
    %s59 = sphi 0, %s56
    %s60 = sphi 0, %s59
    %s76 = sphi 0, %s60
    %s80 = sphi 0, %s80
    %s82 = sphi 0, %s80
    %s83 = sphi 0, %s82
    %s97 = sphi 0, %s83
    %s101 = sphi 0, %s101
    %s103 = sphi 0, %s101
    %s104 = sphi 0, %s103
    %s118 = sphi 0, %s104
    %s122 = sphi 0, %s122
    %s124 = sphi 0, %s122
    %s125 = sphi 0, %s124
    %s139 = sphi 0, %s125
    %s143 = sphi 0, %s143
    %s145 = sphi 0, %s143
    %s146 = sphi 0, %s145
    %s160 = sphi 0, %s146
    %s164 = sphi 0, %s164
    %s166 = sphi 0, %s164
    %s167 = sphi 0, %s166
    %s181 = sphi 0, %s167
    %s185 = sphi 0, %s185
    %s187 = sphi 0, %s185
    %s188 = sphi 0, %s187
    %s202 = sphi 0, %s188
    %s206 = sphi 0, %s206
    %s208 = sphi 0, %s206
    %s209 = sphi 0, %s208
    %s223 = sphi 0, %s209
    %s227 = sphi 0, %s227
    %s229 = sphi 0, %s227
    %s230 = sphi 0, %s229
    %s244 = sphi 0, %s230
    %s248 = sphi 0, %s248
    %s250 = sphi 0, %s248
    %s251 = sphi 0, %s250
    %s265 = sphi 0, %s251
    %s269 = sphi 0, %s269
    %s271 = sphi 0, %s269
    %s272 = sphi 0, %s271
    %s286 = sphi 0, %s272
    %s292 = sphi 0, %s294
    %s295 = sphi 0, %s292
    %s296 = sphi 0, %s295
    %s312 = sphi 0, %s296
    %s318 = sphi 0, %s320
    %s321 = sphi 0, %s318
    %s322 = sphi 0, %s321
    %s338 = sphi 0, %s322
  $region4: #{fourier_block_forward.4} parent=0 // loop_header_branch
    %23 = sbr.rel (%p21) target = $region8
  $region5: #{fourier_block_forward.4} parent=0 // loop_body
    %s25 = ssub.s32 %s20, 1
    %s26 = ssub.s32 %s20, 2
    %s27 = sadd.s32 %s20, 1
    %s28 = ssub.s32 %s20, %s27
    %p29 = scmp.eq.s32.totalorder %s28, 0
    %s31 = sadd.s32 %s30, 1
    %s32 = scalar_select %p29, %s30, %s31
    %p35 = pneg %p29
    %p36 = scmp.eq.s32.totalorder %s20, 4
    %p37 = por %p35, %p36
    %p38 = scmp.ne.s32.totalorder %s30, %s33
    %p39 = scmp.eq.s32.totalorder %s20, 0
    %p40 = por %p38, %p39
    %p41 = scmp.ne.s32.totalorder %s30, %s33
    %p42 = scmp.eq.s32.totalorder %s25, 4
    %p43 = por %p41, %p42
    %p44 = scmp.ne.s32.totalorder %s33, %s34
    %p45 = scmp.eq.s32.totalorder %s25, 0
    %p46 = por %p44, %p45
    %p47 = scmp.ne.s32.totalorder %s33, %s34
    %p48 = scmp.eq.s32.totalorder %s26, 4
    %p49 = por %p47, %p48
    %p51 = scmp.ne.s32.totalorder %s34, %s50
    %p52 = scmp.eq.s32.totalorder %s26, 0
    %p53 = por %p51, %p52
    %s54 = ssub.s32 %s20, %s27
    %p55 = scmp.eq.s32.totalorder %s54, 0
    %s57 = sadd.s32 %s56, 1
    %s58 = scalar_select %p55, %s56, %s57
    %p61 = pneg %p55
    %p62 = scmp.eq.s32.totalorder %s20, 4
    %p63 = por %p61, %p62
    %p64 = scmp.ne.s32.totalorder %s56, %s59
    %p65 = scmp.eq.s32.totalorder %s20, 0
    %p66 = por %p64, %p65
    %p67 = scmp.ne.s32.totalorder %s56, %s59
    %p68 = scmp.eq.s32.totalorder %s25, 4
    %p69 = por %p67, %p68
    %p70 = scmp.ne.s32.totalorder %s59, %s60
    %p71 = scmp.eq.s32.totalorder %s25, 0
    %p72 = por %p70, %p71
    %p73 = scmp.ne.s32.totalorder %s59, %s60
    %p74 = scmp.eq.s32.totalorder %s26, 4
    %p75 = por %p73, %p74
    %p77 = scmp.ne.s32.totalorder %s60, %s76
    %p78 = scmp.eq.s32.totalorder %s26, 0
    %p79 = por %p77, %p78
    %s81 = sadd.s32 %s80, 1
    %p84 = scmp.eq.s32.totalorder %s20, 4
    %p85 = scmp.ne.s32.totalorder %s80, %s82
    %p86 = scmp.eq.s32.totalorder %s20, 0
    %p87 = por %p85, %p86
    %p88 = scmp.ne.s32.totalorder %s80, %s82
    %p89 = scmp.eq.s32.totalorder %s25, 4
    %p90 = por %p88, %p89
    %p91 = scmp.ne.s32.totalorder %s82, %s83
    %p92 = scmp.eq.s32.totalorder %s25, 0
    %p93 = por %p91, %p92
    %p94 = scmp.ne.s32.totalorder %s82, %s83
    %p95 = scmp.eq.s32.totalorder %s26, 4
    %p96 = por %p94, %p95
    %p98 = scmp.ne.s32.totalorder %s83, %s97
    %p99 = scmp.eq.s32.totalorder %s26, 0
    %p100 = por %p98, %p99
    %s102 = sadd.s32 %s101, 1
    %p105 = scmp.eq.s32.totalorder %s20, 4
    %p106 = scmp.ne.s32.totalorder %s101, %s103
    %p107 = scmp.eq.s32.totalorder %s20, 0
    %p108 = por %p106, %p107
    %p109 = scmp.ne.s32.totalorder %s101, %s103
    %p110 = scmp.eq.s32.totalorder %s25, 4
    %p111 = por %p109, %p110
    %p112 = scmp.ne.s32.totalorder %s103, %s104
    %p113 = scmp.eq.s32.totalorder %s25, 0
    %p114 = por %p112, %p113
    %p115 = scmp.ne.s32.totalorder %s103, %s104
    %p116 = scmp.eq.s32.totalorder %s26, 4
    %p117 = por %p115, %p116
    %p119 = scmp.ne.s32.totalorder %s104, %s118
    %p120 = scmp.eq.s32.totalorder %s26, 0
    %p121 = por %p119, %p120
    %s123 = sadd.s32 %s122, 1
    %p126 = scmp.eq.s32.totalorder %s20, 4
    %p127 = scmp.ne.s32.totalorder %s122, %s124
    %p128 = scmp.eq.s32.totalorder %s20, 0
    %p129 = por %p127, %p128
    %p130 = scmp.ne.s32.totalorder %s122, %s124
    %p131 = scmp.eq.s32.totalorder %s25, 4
    %p132 = por %p130, %p131
    %p133 = scmp.ne.s32.totalorder %s124, %s125
    %p134 = scmp.eq.s32.totalorder %s25, 0
    %p135 = por %p133, %p134
    %p136 = scmp.ne.s32.totalorder %s124, %s125
    %p137 = scmp.eq.s32.totalorder %s26, 4
    %p138 = por %p136, %p137
    %p140 = scmp.ne.s32.totalorder %s125, %s139
    %p141 = scmp.eq.s32.totalorder %s26, 0
    %p142 = por %p140, %p141
    %s144 = sadd.s32 %s143, 1
    %p147 = scmp.eq.s32.totalorder %s20, 4
    %p148 = scmp.ne.s32.totalorder %s143, %s145
    %p149 = scmp.eq.s32.totalorder %s20, 0
    %p150 = por %p148, %p149
    %p151 = scmp.ne.s32.totalorder %s143, %s145
    %p152 = scmp.eq.s32.totalorder %s25, 4
    %p153 = por %p151, %p152
    %p154 = scmp.ne.s32.totalorder %s145, %s146
    %p155 = scmp.eq.s32.totalorder %s25, 0
    %p156 = por %p154, %p155
    %p157 = scmp.ne.s32.totalorder %s145, %s146
    %p158 = scmp.eq.s32.totalorder %s26, 4
    %p159 = por %p157, %p158
    %p161 = scmp.ne.s32.totalorder %s146, %s160
    %p162 = scmp.eq.s32.totalorder %s26, 0
    %p163 = por %p161, %p162
    %s165 = sadd.s32 %s164, 1
    %p168 = scmp.eq.s32.totalorder %s20, 4
    %p169 = scmp.ne.s32.totalorder %s164, %s166
    %p170 = scmp.eq.s32.totalorder %s20, 0
    %p171 = por %p169, %p170
    %p172 = scmp.ne.s32.totalorder %s164, %s166
    %p173 = scmp.eq.s32.totalorder %s25, 4
    %p174 = por %p172, %p173
    %p175 = scmp.ne.s32.totalorder %s166, %s167
    %p176 = scmp.eq.s32.totalorder %s25, 0
    %p177 = por %p175, %p176
    %p178 = scmp.ne.s32.totalorder %s166, %s167
    %p179 = scmp.eq.s32.totalorder %s26, 4
    %p180 = por %p178, %p179
    %p182 = scmp.ne.s32.totalorder %s167, %s181
    %p183 = scmp.eq.s32.totalorder %s26, 0
    %p184 = por %p182, %p183
    %s186 = sadd.s32 %s185, 1
    %p189 = scmp.eq.s32.totalorder %s20, 4
    %p190 = scmp.ne.s32.totalorder %s185, %s187
    %p191 = scmp.eq.s32.totalorder %s20, 0
    %p192 = por %p190, %p191
    %p193 = scmp.ne.s32.totalorder %s185, %s187
    %p194 = scmp.eq.s32.totalorder %s25, 4
    %p195 = por %p193, %p194
    %p196 = scmp.ne.s32.totalorder %s187, %s188
    %p197 = scmp.eq.s32.totalorder %s25, 0
    %p198 = por %p196, %p197
    %p199 = scmp.ne.s32.totalorder %s187, %s188
    %p200 = scmp.eq.s32.totalorder %s26, 4
    %p201 = por %p199, %p200
    %p203 = scmp.ne.s32.totalorder %s188, %s202
    %p204 = scmp.eq.s32.totalorder %s26, 0
    %p205 = por %p203, %p204
    %s207 = sadd.s32 %s206, 1
    %p210 = scmp.eq.s32.totalorder %s20, 4
    %p211 = scmp.ne.s32.totalorder %s206, %s208
    %p212 = scmp.eq.s32.totalorder %s20, 0
    %p213 = por %p211, %p212
    %p214 = scmp.ne.s32.totalorder %s206, %s208
    %p215 = scmp.eq.s32.totalorder %s25, 4
    %p216 = por %p214, %p215
    %p217 = scmp.ne.s32.totalorder %s208, %s209
    %p218 = scmp.eq.s32.totalorder %s25, 0
    %p219 = por %p217, %p218
    %p220 = scmp.ne.s32.totalorder %s208, %s209
    %p221 = scmp.eq.s32.totalorder %s26, 4
    %p222 = por %p220, %p221
    %p224 = scmp.ne.s32.totalorder %s209, %s223
    %p225 = scmp.eq.s32.totalorder %s26, 0
    %p226 = por %p224, %p225
    %s228 = sadd.s32 %s227, 1
    %p231 = scmp.eq.s32.totalorder %s20, 4
    %p232 = scmp.ne.s32.totalorder %s227, %s229
    %p233 = scmp.eq.s32.totalorder %s20, 0
    %p234 = por %p232, %p233
    %p235 = scmp.ne.s32.totalorder %s227, %s229
    %p236 = scmp.eq.s32.totalorder %s25, 4
    %p237 = por %p235, %p236
    %p238 = scmp.ne.s32.totalorder %s229, %s230
    %p239 = scmp.eq.s32.totalorder %s25, 0
    %p240 = por %p238, %p239
    %p241 = scmp.ne.s32.totalorder %s229, %s230
    %p242 = scmp.eq.s32.totalorder %s26, 4
    %p243 = por %p241, %p242
    %p245 = scmp.ne.s32.totalorder %s230, %s244
    %p246 = scmp.eq.s32.totalorder %s26, 0
    %p247 = por %p245, %p246
    %s249 = sadd.s32 %s248, 1
    %p252 = scmp.eq.s32.totalorder %s20, 4
    %p253 = scmp.ne.s32.totalorder %s248, %s250
    %p254 = scmp.eq.s32.totalorder %s20, 0
    %p255 = por %p253, %p254
    %p256 = scmp.ne.s32.totalorder %s248, %s250
    %p257 = scmp.eq.s32.totalorder %s25, 4
    %p258 = por %p256, %p257
    %p259 = scmp.ne.s32.totalorder %s250, %s251
    %p260 = scmp.eq.s32.totalorder %s25, 0
    %p261 = por %p259, %p260
    %p262 = scmp.ne.s32.totalorder %s250, %s251
    %p263 = scmp.eq.s32.totalorder %s26, 4
    %p264 = por %p262, %p263
    %p266 = scmp.ne.s32.totalorder %s251, %s265
    %p267 = scmp.eq.s32.totalorder %s26, 0
    %p268 = por %p266, %p267
    %s270 = sadd.s32 %s269, 1
    %p273 = scmp.eq.s32.totalorder %s20, 4
    %p274 = scmp.ne.s32.totalorder %s269, %s271
    %p275 = scmp.eq.s32.totalorder %s20, 0
    %p276 = por %p274, %p275
    %p277 = scmp.ne.s32.totalorder %s269, %s271
    %p278 = scmp.eq.s32.totalorder %s25, 4
    %p279 = por %p277, %p278
    %p280 = scmp.ne.s32.totalorder %s271, %s272
    %p281 = scmp.eq.s32.totalorder %s25, 0
    %p282 = por %p280, %p281
    %p283 = scmp.ne.s32.totalorder %s271, %s272
    %p284 = scmp.eq.s32.totalorder %s26, 4
    %p285 = por %p283, %p284
    %p287 = scmp.ne.s32.totalorder %s272, %s286
    %p288 = scmp.eq.s32.totalorder %s26, 0
    %p289 = por %p287, %p288
    %s290 = ssub.s32 %s20, %s27
    %p291 = scmp.eq.s32.totalorder %s290, 0
    %s293 = sadd.s32 %s292, 1
    %s294 = scalar_select %p291, %s292, %s293
    %p297 = pneg %p291
    %p298 = scmp.eq.s32.totalorder %s20, 4
    %p299 = por %p297, %p298
    %p300 = scmp.ne.s32.totalorder %s292, %s295
    %p301 = scmp.eq.s32.totalorder %s20, 0
    %p302 = por %p300, %p301
    %p303 = scmp.ne.s32.totalorder %s292, %s295
    %p304 = scmp.eq.s32.totalorder %s25, 4
    %p305 = por %p303, %p304
    %p306 = scmp.ne.s32.totalorder %s295, %s296
    %p307 = scmp.eq.s32.totalorder %s25, 0
    %p308 = por %p306, %p307
    %p309 = scmp.ne.s32.totalorder %s295, %s296
    %p310 = scmp.eq.s32.totalorder %s26, 4
    %p311 = por %p309, %p310
    %p313 = scmp.ne.s32.totalorder %s296, %s312
    %p314 = scmp.eq.s32.totalorder %s26, 0
    %p315 = por %p313, %p314
    %s316 = ssub.s32 %s20, %s27
    %p317 = scmp.eq.s32.totalorder %s316, 0
    %s319 = sadd.s32 %s318, 1
    %s320 = scalar_select %p317, %s318, %s319
    %p323 = pneg %p317
    %p324 = scmp.eq.s32.totalorder %s20, 4
    %p325 = por %p323, %p324
    %p326 = scmp.ne.s32.totalorder %s318, %s321
    %p327 = scmp.eq.s32.totalorder %s20, 0
    %p328 = por %p326, %p327
    %p329 = scmp.ne.s32.totalorder %s318, %s321
    %p330 = scmp.eq.s32.totalorder %s25, 4
    %p331 = por %p329, %p330
    %p332 = scmp.ne.s32.totalorder %s321, %s322
    %p333 = scmp.eq.s32.totalorder %s25, 0
    %p334 = por %p332, %p333
    %p335 = scmp.ne.s32.totalorder %s321, %s322
    %p336 = scmp.eq.s32.totalorder %s26, 4
    %p337 = por %p335, %p336
    %p339 = scmp.ne.s32.totalorder %s322, %s338
    %p340 = scmp.eq.s32.totalorder %s26, 0
    %p341 = por %p339, %p340
    %p342 = scmp.le.s32.totalorder 1, %s20
    %p343 = scmp.lt.s32.totalorder %s20, 6
    %p344 = pnand %p342, %p343
    %p345 = pneg %p344
    // Predicated region
    $region9: #{fourier_block_forward.4} parent=5 // pred_check
      _
    $region10: #{fourier_block_forward.4} parent=5 // pred_check_branch
      %347 = sbr.rel (%p344) target = $region12
    $region11: #{fourier_block_forward.4} parent=5 // pred_region
      %s348 = ssub.s32 %s20, 1
      // Predicated region
      $region13: #{fourier_block_forward.4} parent=11 // pred_check
        %p349 = pneg %p93
      $region14: #{fourier_block_forward.4} parent=11 // pred_check_branch
        %351 = sbr.rel (%p349) target = $region16
      $region15: #{fourier_block_forward.4} parent=11 // pred_region
        _
      $region16: #{fourier_block_forward.4} parent=11 // pred_fallthru
        _
      // Predicated region
      $region17: #{fourier_block_forward.4} parent=11 // pred_check
        %p352 = pneg %p114
      $region18: #{fourier_block_forward.4} parent=11 // pred_check_branch
        %354 = sbr.rel (%p352) target = $region20
      $region19: #{fourier_block_forward.4} parent=11 // pred_region
        _
      $region20: #{fourier_block_forward.4} parent=11 // pred_fallthru
        _
      // Predicated region
      $region21: #{fourier_block_forward.4} parent=11 // pred_check
        %p355 = pneg %p135
      $region22: #{fourier_block_forward.4} parent=11 // pred_check_branch
        %357 = sbr.rel (%p355) target = $region24
      $region23: #{fourier_block_forward.4} parent=11 // pred_region
        _
      $region24: #{fourier_block_forward.4} parent=11 // pred_fallthru
        _
      // Predicated region
      $region25: #{fourier_block_forward.4} parent=11 // pred_check
        %p358 = pneg %p156
      $region26: #{fourier_block_forward.4} parent=11 // pred_check_branch
        %360 = sbr.rel (%p358) target = $region28
      $region27: #{fourier_block_forward.4} parent=11 // pred_region
        _
      $region28: #{fourier_block_forward.4} parent=11 // pred_fallthru
        _
      // Predicated region
      $region29: #{fourier_block_forward.4} parent=11 // pred_check
        %p361 = pneg %p177
      $region30: #{fourier_block_forward.4} parent=11 // pred_check_branch
        %363 = sbr.rel (%p361) target = $region32
      $region31: #{fourier_block_forward.4} parent=11 // pred_region
        _
      $region32: #{fourier_block_forward.4} parent=11 // pred_fallthru
        _
      // Predicated region
      $region33: #{fourier_block_forward.4} parent=11 // pred_check
        %p364 = pneg %p198
      $region34: #{fourier_block_forward.4} parent=11 // pred_check_branch
        %366 = sbr.rel (%p364) target = $region36
      $region35: #{fourier_block_forward.4} parent=11 // pred_region
        _
      $region36: #{fourier_block_forward.4} parent=11 // pred_fallthru
        _
      // Predicated region
      $region37: #{fourier_block_forward.4} parent=11 // pred_check
        %p367 = pneg %p219
      $region38: #{fourier_block_forward.4} parent=11 // pred_check_branch
        %369 = sbr.rel (%p367) target = $region40
      $region39: #{fourier_block_forward.4} parent=11 // pred_region
        _
      $region40: #{fourier_block_forward.4} parent=11 // pred_fallthru
        _
      // Predicated region
      $region41: #{fourier_block_forward.4} parent=11 // pred_check
        %p370 = pneg %p240
      $region42: #{fourier_block_forward.4} parent=11 // pred_check_branch
        %372 = sbr.rel (%p370) target = $region44
      $region43: #{fourier_block_forward.4} parent=11 // pred_region
        _
      $region44: #{fourier_block_forward.4} parent=11 // pred_fallthru
        _
      // Predicated region
      $region45: #{fourier_block_forward.4} parent=11 // pred_check
        %p373 = pneg %p261
      $region46: #{fourier_block_forward.4} parent=11 // pred_check_branch
        %375 = sbr.rel (%p373) target = $region48
      $region47: #{fourier_block_forward.4} parent=11 // pred_region
        _
      $region48: #{fourier_block_forward.4} parent=11 // pred_fallthru
        _
      // Predicated region
      $region49: #{fourier_block_forward.4} parent=11 // pred_check
        %p376 = pneg %p282
      $region50: #{fourier_block_forward.4} parent=11 // pred_check_branch
        %378 = sbr.rel (%p376) target = $region52
      $region51: #{fourier_block_forward.4} parent=11 // pred_region
        _
      $region52: #{fourier_block_forward.4} parent=11 // pred_fallthru
        _
    $region12: #{fourier_block_forward.4} parent=5 // pred_fallthru
      _
    %p379 = scmp.lt.s32.totalorder %s20, 5
    // Predicated region
    $region53: #{fourier_block_forward.4} parent=5 // pred_check
      %p380 = pneg %p379
    $region54: #{fourier_block_forward.4} parent=5 // pred_check_branch
      %382 = sbr.rel (%p380) target = $region56
    $region55: #{fourier_block_forward.4} parent=5 // pred_region
      // Predicated region
      $region57: #{fourier_block_forward.4} parent=55 // pred_check
        %p383 = pneg %p40
      $region58: #{fourier_block_forward.4} parent=55 // pred_check_branch
        %385 = sbr.rel (%p383) target = $region60
      $region59: #{fourier_block_forward.4} parent=55 // pred_region
        %s386 = smul.u32 2, %s20
        %p387 = scmp.lt.s32.totalorder %s386, 9
        %s388 = scalar_select %p387, %s386, 9
        %s389 = smul.addr %s388, 4
        %s390 = scalar_lea.vmem %s0, %s389
        %s391 = smul.u32 2, %s20
      $region60: #{fourier_block_forward.4} parent=55 // pred_fallthru
        _
      // Predicated region
      $region61: #{fourier_block_forward.4} parent=55 // pred_check
        %p392 = pneg %p66
      $region62: #{fourier_block_forward.4} parent=55 // pred_check_branch
        %394 = sbr.rel (%p392) target = $region64
      $region63: #{fourier_block_forward.4} parent=55 // pred_region
        %s395 = smul.u32 2, %s20
        %p396 = scmp.lt.s32.totalorder %s395, 9
        %s397 = scalar_select %p396, %s395, 9
        %s398 = smul.addr %s397, 4
        %s399 = scalar_lea.vmem %s1, %s398
        %s400 = smul.u32 2, %s20
      $region64: #{fourier_block_forward.4} parent=55 // pred_fallthru
        _
    $region56: #{fourier_block_forward.4} parent=5 // pred_fallthru
      _
    %p401 = scmp.le.s32.totalorder 1, %s20
    %p402 = scmp.lt.s32.totalorder %s20, 6
    %p403 = pnand %p401, %p402
    %p404 = pneg %p403
    // Predicated region
    $region65: #{fourier_block_forward.4} parent=5 // pred_check
      _
    $region66: #{fourier_block_forward.4} parent=5 // pred_check_branch
      %406 = sbr.rel (%p403) target = $region68
    $region67: #{fourier_block_forward.4} parent=5 // pred_region
      %s407 = ssub.s32 %s20, 1
      %s408 = smul.u32 2, %s25
      %p409 = scmp.lt.s32.totalorder %s408, 9
      %s410 = scalar_select %p409, %s408, 9
      %s411 = smul.addr %s410, 4
      %s412 = scalar_lea.vmem %s0, %s411
      %p413 = pneg %p46
      %p414 = pneg %p43
      %s415 = smul.u32 2, %s25
      %p416 = scmp.lt.s32.totalorder %s415, 9
      %s417 = scalar_select %p416, %s415, 9
      %s418 = smul.addr %s417, 4
      %s419 = scalar_lea.vmem %s1, %s418
      %p420 = pneg %p72
      %p421 = pneg %p69
      %p422 = pneg %p93
      %p423 = pneg %p90
      %p424 = pneg %p114
      %p425 = pneg %p111
      %p426 = pneg %p135
      %p427 = pneg %p132
      %p428 = pneg %p156
      %p429 = pneg %p153
      %p430 = pneg %p177
      %p431 = pneg %p174
      %p432 = pneg %p198
      %p433 = pneg %p195
      %p434 = pneg %p219
      %p435 = pneg %p216
      %p436 = pneg %p240
      %p437 = pneg %p237
      %p438 = pneg %p261
      %p439 = pneg %p258
      %p440 = pneg %p282
      %p441 = pneg %p279
      %p442 = pneg %p308
      %p443 = pneg %p305
      %s444 = smul.u32 2, %s25
      %p445 = scmp.lt.s32.totalorder %s444, 9
      %s446 = scalar_select %p445, %s444, 9
      %s447 = smul.addr %s446, 4
      %s448 = scalar_lea.vmem %s12, %s447
      %p449 = pneg %p334
      %p450 = pneg %p331
      %s451 = smul.u32 2, %s25
      %p452 = scmp.lt.s32.totalorder %s451, 9
      %s453 = scalar_select %p452, %s451, 9
      %s454 = smul.addr %s453, 4
      %s455 = scalar_lea.vmem %s13, %s454
      %s456 = smul.u32 2, %s25
      %p457 = scmp.lt.s32.totalorder %s456, 9
      %s458 = scalar_select %p457, %s456, 9
      %s459 = smul.addr %s458, 4
      %s460 = scalar_lea.vmem %s0, %s459
      %s461 = smul.u32 2, %s25
      %s462 = smul.u32 2, %s25
      %p463 = scmp.lt.s32.totalorder %s462, 9
      %s464 = scalar_select %p463, %s462, 9
      %s465 = smul.addr %s464, 4
      %s466 = scalar_lea.vmem %s1, %s465
      %s467 = smul.u32 2, %s25
      %s468 = smul.u32 2, %s25
      %p469 = scmp.lt.s32.totalorder %s468, 9
      %s470 = scalar_select %p469, %s468, 9
      %s471 = smul.addr %s470, 4
      %s472 = scalar_lea.vmem %s12, %s471
      %s473 = smul.u32 2, %s25
      %s474 = smul.u32 2, %s25
      %p475 = scmp.lt.s32.totalorder %s474, 9
      %s476 = scalar_select %p475, %s474, 9
      %s477 = smul.addr %s476, 4
      %s478 = scalar_lea.vmem %s13, %s477
      %s479 = smul.u32 2, %s25
      %v481 = vld [vmem:[%s460] sm:$0xf]
      %v482 = vld [vmem:[%s460 + $0x4] sm:$0xf]
      %v483 = vld [vmem:[%s466] sm:$0xf]
      %v484 = vld [vmem:[%s466 + $0x4] sm:$0xf]
      %v485 = vadd.bf16 %v481, %v483
      %v486 = vadd.bf16 %v482, %v484
      %v487 = vld [vmem:[%s2] sm:$0xf]
      %v488 = vld [vmem:[%s2 + $0x4] sm:$0xf]
      %v491 = vunpack.c.l.b16 %v485
      %v492 = vunpack.c.l.b16 %v486
      %v493 = vpack.c.b16 %v492, %v491
      %v496 = vunpack.c.l.b16 %v487
      %v497 = vunpack.c.l.b16 %v488
      %v498 = vpack.c.b16 %v497, %v496
      %vm500 = vcmask 130048
      %v502 = vsel %vm500, %v493, 0
      %504 = vmatprep.subr.bf16.mxu0 0
      %505 = vmatpush1.bf16.msra.mxu0 %v498
      %506 = vmatprep.subr.bf16.mxu0 0
      %507 = vmatpush1.bf16.msra.mxu0 0
      %508 = vmatprep.subr.bf16.mxu0 0
      %509 = vmatpush1.bf16.msra.mxu0 0
      %510 = vmatprep.subr.bf16.mxu0 0
      %511 = vmatpush1.bf16.msra.mxu0 0
      %512 = vmatprep.subr.bf16.mxu0 0
      %513 = vmatpush1.bf16.msra.mxu0 0
      %514 = vmatprep.subr.bf16.mxu0 0
      %515 = vmatpush1.bf16.msra.mxu0 0
      %516 = vmatprep.subr.bf16.mxu0 0
      %517 = vmatpush1.bf16.msra.mxu0 0
      %518 = vmatprep.subr.bf16.mxu0 0
      %519 = vmatpush1.bf16.msra.mxu0 0
      %520 = vmatprep.subr.bf16.mxu0 0
      %521 = vmatpush1.bf16.msra.mxu0 0
      %522 = vmatprep.subr.bf16.mxu0 0
      %523 = vmatpush1.bf16.msra.mxu0 0
      %524 = vmatprep.subr.bf16.mxu0 0
      %525 = vmatpush1.bf16.msra.mxu0 0
      %526 = vmatprep.subr.bf16.mxu0 0
      %527 = vmatpush1.bf16.msra.mxu0 0
      %528 = vmatprep.subr.bf16.mxu0 0
      %529 = vmatpush1.bf16.msra.mxu0 0
      %530 = vmatprep.subr.bf16.mxu0 0
      %531 = vmatpush1.bf16.msra.mxu0 0
      %532 = vmatprep.subr.bf16.mxu0 0
      %533 = vmatpush1.bf16.msra.mxu0 0
      %534 = vmatprep.subr.bf16.mxu0 0
      %535 = vmatpush1.bf16.msra.mxu0 0
      %536 = vmatprep.mubr.bf16.mxu0 0
      %537 = vmatmul.mubr.bf16.gmra.mrb[0].mxu0 %v502
      %v538 = vpop.f32.mrb[0].mxu0
      %v539 = vadd.f32 0.0, %v538
      %v540 = vpop.f32.mrb[0].mxu0
      %v541 = vpop.f32.mrb[0].mxu0
      %v542 = vadd.f32 0.0, %v541
      %v543 = vpop.f32.mrb[0].mxu0
      %544 = vdwg.mxu0
      %v545 = vld [vmem:[%s3] sm:$0xf]
      %v546 = vld [vmem:[%s3 + $0x4] sm:$0xf]
      %v549 = vunpack.c.l.b16 %v481
      %v550 = vunpack.c.l.b16 %v482
      %v551 = vpack.c.b16 %v550, %v549
      %v554 = vunpack.c.l.b16 %v545
      %v555 = vunpack.c.l.b16 %v546
      %v556 = vpack.c.b16 %v555, %v554
      %v559 = vsel %vm500, %v551, 0
      %561 = vmatprep.subr.bf16.mxu0 0
      %562 = vmatpush1.bf16.msra.mxu0 %v556
      %563 = vmatprep.subr.bf16.mxu0 0
      %564 = vmatpush1.bf16.msra.mxu0 0
      %565 = vmatprep.subr.bf16.mxu0 0
      %566 = vmatpush1.bf16.msra.mxu0 0
      %567 = vmatprep.subr.bf16.mxu0 0
      %568 = vmatpush1.bf16.msra.mxu0 0
      %569 = vmatprep.subr.bf16.mxu0 0
      %570 = vmatpush1.bf16.msra.mxu0 0
      %571 = vmatprep.subr.bf16.mxu0 0
      %572 = vmatpush1.bf16.msra.mxu0 0
      %573 = vmatprep.subr.bf16.mxu0 0
      %574 = vmatpush1.bf16.msra.mxu0 0
      %575 = vmatprep.subr.bf16.mxu0 0
      %576 = vmatpush1.bf16.msra.mxu0 0
      %577 = vmatprep.subr.bf16.mxu0 0
      %578 = vmatpush1.bf16.msra.mxu0 0
      %579 = vmatprep.subr.bf16.mxu0 0
      %580 = vmatpush1.bf16.msra.mxu0 0
      %581 = vmatprep.subr.bf16.mxu0 0
      %582 = vmatpush1.bf16.msra.mxu0 0
      %583 = vmatprep.subr.bf16.mxu0 0
      %584 = vmatpush1.bf16.msra.mxu0 0
      %585 = vmatprep.subr.bf16.mxu0 0
      %586 = vmatpush1.bf16.msra.mxu0 0
      %587 = vmatprep.subr.bf16.mxu0 0
      %588 = vmatpush1.bf16.msra.mxu0 0
      %589 = vmatprep.subr.bf16.mxu0 0
      %590 = vmatpush1.bf16.msra.mxu0 0
      %591 = vmatprep.subr.bf16.mxu0 0
      %592 = vmatpush1.bf16.msra.mxu0 0
      %593 = vmatprep.mubr.bf16.mxu0 0
      %594 = vmatmul.mubr.bf16.gmra.mrb[0].mxu0 %v559
      %v595 = vpop.f32.mrb[0].mxu0
      %v596 = vadd.f32 0.0, %v595
      %v597 = vpop.f32.mrb[0].mxu0
      %v598 = vpop.f32.mrb[0].mxu0
      %v599 = vadd.f32 0.0, %v598
      %v600 = vpop.f32.mrb[0].mxu0
      %601 = vdwg.mxu0
      %v602 = vld [vmem:[%s4] sm:$0xf]
      %v603 = vld [vmem:[%s4 + $0x4] sm:$0xf]
      %v606 = vunpack.c.l.b16 %v483
      %v607 = vunpack.c.l.b16 %v484
      %v608 = vpack.c.b16 %v607, %v606
      %v611 = vunpack.c.l.b16 %v602
      %v612 = vunpack.c.l.b16 %v603
      %v613 = vpack.c.b16 %v612, %v611
      %v616 = vsel %vm500, %v608, 0
      %618 = vmatprep.subr.bf16.mxu0 0
      %619 = vmatpush1.bf16.msra.mxu0 %v613
      %620 = vmatprep.subr.bf16.mxu0 0
      %621 = vmatpush1.bf16.msra.mxu0 0
      %622 = vmatprep.subr.bf16.mxu0 0
      %623 = vmatpush1.bf16.msra.mxu0 0
      %624 = vmatprep.subr.bf16.mxu0 0
      %625 = vmatpush1.bf16.msra.mxu0 0
      %626 = vmatprep.subr.bf16.mxu0 0
      %627 = vmatpush1.bf16.msra.mxu0 0
      %628 = vmatprep.subr.bf16.mxu0 0
      %629 = vmatpush1.bf16.msra.mxu0 0
      %630 = vmatprep.subr.bf16.mxu0 0
      %631 = vmatpush1.bf16.msra.mxu0 0
      %632 = vmatprep.subr.bf16.mxu0 0
      %633 = vmatpush1.bf16.msra.mxu0 0
      %634 = vmatprep.subr.bf16.mxu0 0
      %635 = vmatpush1.bf16.msra.mxu0 0
      %636 = vmatprep.subr.bf16.mxu0 0
      %637 = vmatpush1.bf16.msra.mxu0 0
      %638 = vmatprep.subr.bf16.mxu0 0
      %639 = vmatpush1.bf16.msra.mxu0 0
      %640 = vmatprep.subr.bf16.mxu0 0
      %641 = vmatpush1.bf16.msra.mxu0 0
      %642 = vmatprep.subr.bf16.mxu0 0
      %643 = vmatpush1.bf16.msra.mxu0 0
      %644 = vmatprep.subr.bf16.mxu0 0
      %645 = vmatpush1.bf16.msra.mxu0 0
      %646 = vmatprep.subr.bf16.mxu0 0
      %647 = vmatpush1.bf16.msra.mxu0 0
      %648 = vmatprep.subr.bf16.mxu0 0
      %649 = vmatpush1.bf16.msra.mxu0 0
      %650 = vmatprep.mubr.bf16.mxu0 0
      %651 = vmatmul.mubr.bf16.gmra.mrb[0].mxu0 %v616
      %v652 = vpop.f32.mrb[0].mxu0
      %v653 = vadd.f32 0.0, %v652
      %v654 = vpop.f32.mrb[0].mxu0
      %v655 = vpop.f32.mrb[0].mxu0
      %v656 = vadd.f32 0.0, %v655
      %v657 = vpop.f32.mrb[0].mxu0
      %658 = vdwg.mxu0
      %v659 = vsub.f32 %v539, %v653
      %v660 = vsub.f32 %v542, %v656
      %v661 = vld [vmem:[%s5] sm:$0x1]
      %v663 = vlaneseq
      %v664 = vshrl.u32 %v663, 7
      %v665 = vsub.s32 0, %v664
      %v666 = vrot.slane %v661, %v665
      %v668 = vadd.f32 %v659, %v666
      %v669 = vadd.f32 %v660, %v666
      %v670 = vmax.f32 %v668, 0.0
      %v671 = vmax.f32 %v669, 0.0
      %v672 = vpack.c.bf16 %v671, %v670
      %v673 = vadd.f32 %v539, %v596
      %v674 = vadd.f32 %v542, %v599
      %v675 = vld [vmem:[%s6] sm:$0x1]
      %v677 = vlaneseq
      %v678 = vshrl.u32 %v677, 7
      %v679 = vsub.s32 0, %v678
      %v680 = vrot.slane %v675, %v679
      %v682 = vadd.f32 %v673, %v680
      %v683 = vadd.f32 %v674, %v680
      %v684 = vmax.f32 %v682, 0.0
      %v685 = vmax.f32 %v683, 0.0
      %v686 = vpack.c.bf16 %v685, %v684
      %v687 = vadd.bf16 %v672, %v686
      %v688 = vld [vmem:[%s7] sm:$0xf]
      %v689 = vld [vmem:[%s7 + $0x4] sm:$0xf]
      %v692 = vunpack.c.l.b16 %v688
      %v693 = vunpack.c.l.b16 %v689
      %v694 = vpack.c.b16 %v693, %v692
      %v697 = vsel %vm500, %v687, 0
      %699 = vmatprep.subr.bf16.mxu0 0
      %700 = vmatpush1.bf16.msra.mxu0 %v694
      %701 = vmatprep.subr.bf16.mxu0 0
      %702 = vmatpush1.bf16.msra.mxu0 0
      %703 = vmatprep.subr.bf16.mxu0 0
      %704 = vmatpush1.bf16.msra.mxu0 0
      %705 = vmatprep.subr.bf16.mxu0 0
      %706 = vmatpush1.bf16.msra.mxu0 0
      %707 = vmatprep.subr.bf16.mxu0 0
      %708 = vmatpush1.bf16.msra.mxu0 0
      %709 = vmatprep.subr.bf16.mxu0 0
      %710 = vmatpush1.bf16.msra.mxu0 0
      %711 = vmatprep.subr.bf16.mxu0 0
      %712 = vmatpush1.bf16.msra.mxu0 0
      %713 = vmatprep.subr.bf16.mxu0 0
      %714 = vmatpush1.bf16.msra.mxu0 0
      %715 = vmatprep.subr.bf16.mxu0 0
      %716 = vmatpush1.bf16.msra.mxu0 0
      %717 = vmatprep.subr.bf16.mxu0 0
      %718 = vmatpush1.bf16.msra.mxu0 0
      %719 = vmatprep.subr.bf16.mxu0 0
      %720 = vmatpush1.bf16.msra.mxu0 0
      %721 = vmatprep.subr.bf16.mxu0 0
      %722 = vmatpush1.bf16.msra.mxu0 0
      %723 = vmatprep.subr.bf16.mxu0 0
      %724 = vmatpush1.bf16.msra.mxu0 0
      %725 = vmatprep.subr.bf16.mxu0 0
      %726 = vmatpush1.bf16.msra.mxu0 0
      %727 = vmatprep.subr.bf16.mxu0 0
      %728 = vmatpush1.bf16.msra.mxu0 0
      %729 = vmatprep.subr.bf16.mxu0 0
      %730 = vmatpush1.bf16.msra.mxu0 0
      %731 = vmatprep.mubr.bf16.mxu0 0
      %732 = vmatmul.mubr.bf16.gmra.mrb[0].mxu0 %v697
      %v733 = vpop.f32.mrb[0].mxu0
      %v734 = vadd.f32 0.0, %v733
      %v735 = vpop.f32.mrb[0].mxu0
      %v736 = vpop.f32.mrb[0].mxu0
      %v737 = vadd.f32 0.0, %v736
      %v738 = vpop.f32.mrb[0].mxu0
      %739 = vdwg.mxu0
      %v740 = vld [vmem:[%s8] sm:$0xf]
      %v741 = vld [vmem:[%s8 + $0x4] sm:$0xf]
      %v744 = vunpack.c.l.b16 %v740
      %v745 = vunpack.c.l.b16 %v741
      %v746 = vpack.c.b16 %v745, %v744
      %v749 = vsel %vm500, %v672, 0
      %751 = vmatprep.subr.bf16.mxu0 0
      %752 = vmatpush1.bf16.msra.mxu0 %v746
      %753 = vmatprep.subr.bf16.mxu0 0
      %754 = vmatpush1.bf16.msra.mxu0 0
      %755 = vmatprep.subr.bf16.mxu0 0
      %756 = vmatpush1.bf16.msra.mxu0 0
      %757 = vmatprep.subr.bf16.mxu0 0
      %758 = vmatpush1.bf16.msra.mxu0 0
      %759 = vmatprep.subr.bf16.mxu0 0
      %760 = vmatpush1.bf16.msra.mxu0 0
      %761 = vmatprep.subr.bf16.mxu0 0
      %762 = vmatpush1.bf16.msra.mxu0 0
      %763 = vmatprep.subr.bf16.mxu0 0
      %764 = vmatpush1.bf16.msra.mxu0 0
      %765 = vmatprep.subr.bf16.mxu0 0
      %766 = vmatpush1.bf16.msra.mxu0 0
      %767 = vmatprep.subr.bf16.mxu0 0
      %768 = vmatpush1.bf16.msra.mxu0 0
      %769 = vmatprep.subr.bf16.mxu0 0
      %770 = vmatpush1.bf16.msra.mxu0 0
      %771 = vmatprep.subr.bf16.mxu0 0
      %772 = vmatpush1.bf16.msra.mxu0 0
      %773 = vmatprep.subr.bf16.mxu0 0
      %774 = vmatpush1.bf16.msra.mxu0 0
      %775 = vmatprep.subr.bf16.mxu0 0
      %776 = vmatpush1.bf16.msra.mxu0 0
      %777 = vmatprep.subr.bf16.mxu0 0
      %778 = vmatpush1.bf16.msra.mxu0 0
      %779 = vmatprep.subr.bf16.mxu0 0
      %780 = vmatpush1.bf16.msra.mxu0 0
      %781 = vmatprep.subr.bf16.mxu0 0
      %782 = vmatpush1.bf16.msra.mxu0 0
      %783 = vmatprep.mubr.bf16.mxu0 0
      %784 = vmatmul.mubr.bf16.gmra.mrb[0].mxu0 %v749
      %v785 = vpop.f32.mrb[0].mxu0
      %v786 = vadd.f32 0.0, %v785
      %v787 = vpop.f32.mrb[0].mxu0
      %v788 = vpop.f32.mrb[0].mxu0
      %v789 = vadd.f32 0.0, %v788
      %v790 = vpop.f32.mrb[0].mxu0
      %791 = vdwg.mxu0
      %v792 = vld [vmem:[%s9] sm:$0xf]
      %v793 = vld [vmem:[%s9 + $0x4] sm:$0xf]
      %v796 = vunpack.c.l.b16 %v792
      %v797 = vunpack.c.l.b16 %v793
      %v798 = vpack.c.b16 %v797, %v796
      %v801 = vsel %vm500, %v686, 0
      %803 = vmatprep.subr.bf16.mxu0 0
      %804 = vmatpush1.bf16.msra.mxu0 %v798
      %805 = vmatprep.subr.bf16.mxu0 0
      %806 = vmatpush1.bf16.msra.mxu0 0
      %807 = vmatprep.subr.bf16.mxu0 0
      %808 = vmatpush1.bf16.msra.mxu0 0
      %809 = vmatprep.subr.bf16.mxu0 0
      %810 = vmatpush1.bf16.msra.mxu0 0
      %811 = vmatprep.subr.bf16.mxu0 0
      %812 = vmatpush1.bf16.msra.mxu0 0
      %813 = vmatprep.subr.bf16.mxu0 0
      %814 = vmatpush1.bf16.msra.mxu0 0
      %815 = vmatprep.subr.bf16.mxu0 0
      %816 = vmatpush1.bf16.msra.mxu0 0
      %817 = vmatprep.subr.bf16.mxu0 0
      %818 = vmatpush1.bf16.msra.mxu0 0
      %819 = vmatprep.subr.bf16.mxu0 0
      %820 = vmatpush1.bf16.msra.mxu0 0
      %821 = vmatprep.subr.bf16.mxu0 0
      %822 = vmatpush1.bf16.msra.mxu0 0
      %823 = vmatprep.subr.bf16.mxu0 0
      %824 = vmatpush1.bf16.msra.mxu0 0
      %825 = vmatprep.subr.bf16.mxu0 0
      %826 = vmatpush1.bf16.msra.mxu0 0
      %827 = vmatprep.subr.bf16.mxu0 0
      %828 = vmatpush1.bf16.msra.mxu0 0
      %829 = vmatprep.subr.bf16.mxu0 0
      %830 = vmatpush1.bf16.msra.mxu0 0
      %831 = vmatprep.subr.bf16.mxu0 0
      %832 = vmatpush1.bf16.msra.mxu0 0
      %833 = vmatprep.subr.bf16.mxu0 0
      %834 = vmatpush1.bf16.msra.mxu0 0
      %835 = vmatprep.mubr.bf16.mxu0 0
      %836 = vmatmul.mubr.bf16.gmra.mrb[0].mxu0 %v801
      %v837 = vpop.f32.mrb[0].mxu0
      %v838 = vadd.f32 0.0, %v837
      %v839 = vpop.f32.mrb[0].mxu0
      %v840 = vpop.f32.mrb[0].mxu0
      %v841 = vadd.f32 0.0, %v840
      %v842 = vpop.f32.mrb[0].mxu0
      %843 = vdwg.mxu0
      %v844 = vsub.f32 %v734, %v838
      %v845 = vsub.f32 %v737, %v841
      %v846 = vld [vmem:[%s10] sm:$0x1]
      %v848 = vlaneseq
      %v849 = vshrl.u32 %v848, 7
      %v850 = vsub.s32 0, %v849
      %v851 = vrot.slane %v846, %v850
      %v853 = vadd.f32 %v844, %v851
      %v854 = vadd.f32 %v845, %v851
      %vm855 = vcmp.gt.f32.partialorder %v853, 0.01
      %vm856 = vcmp.gt.f32.partialorder %v854, 0.01
      %v857 = vsub.f32 %v853, 0.01
      %v858 = vsub.f32 %v854, 0.01
      %vm859 = vcmp.lt.f32.partialorder %v853, -0.01
      %vm860 = vcmp.lt.f32.partialorder %v854, -0.01
      %v861 = vadd.f32 %v853, 0.01
      %v862 = vadd.f32 %v854, 0.01
      %v863 = vsel %vm859, %v861, 0.0
      %v864 = vsel %vm860, %v862, 0.0
      %v865 = vsel %vm855, %v857, %v863
      %v866 = vsel %vm856, %v858, %v864
      %v867 = vpack.c.bf16 %v866, %v865
      %v869 = vunpack.c.l.b16 %v867
      %v870 = vunpack.c.h.b16 %v867
      %v871 = vpack.c.b16 %v869, %v869
      %v872 = vpack.c.b16 %v870, %v870
      %vm875 = vcmask 125952
      %876 = vst.msk [vmem:[%s472] sm:$0xf] %vm875, %v871
      %877 = vst.msk [vmem:[%s472 + $0x4] sm:$0xf] %vm875, %v872
      %v878 = vadd.f32 %v734, %v786
      %v879 = vadd.f32 %v737, %v789
      %v880 = vld [vmem:[%s11] sm:$0x1]
      %v882 = vlaneseq
      %v883 = vshrl.u32 %v882, 7
      %v884 = vsub.s32 0, %v883
      %v885 = vrot.slane %v880, %v884
      %v887 = vadd.f32 %v878, %v885
      %v888 = vadd.f32 %v879, %v885
      %vm889 = vcmp.gt.f32.partialorder %v887, 0.01
      %vm890 = vcmp.gt.f32.partialorder %v888, 0.01
      %v891 = vsub.f32 %v887, 0.01
      %v892 = vsub.f32 %v888, 0.01
      %vm893 = vcmp.lt.f32.partialorder %v887, -0.01
      %vm894 = vcmp.lt.f32.partialorder %v888, -0.01
      %v895 = vadd.f32 %v887, 0.01
      %v896 = vadd.f32 %v888, 0.01
      %v897 = vsel %vm893, %v895, 0.0
      %v898 = vsel %vm894, %v896, 0.0
      %v899 = vsel %vm889, %v891, %v897
      %v900 = vsel %vm890, %v892, %v898
      %v901 = vpack.c.bf16 %v900, %v899
      %v903 = vunpack.c.l.b16 %v901
      %v904 = vunpack.c.h.b16 %v901
      %v905 = vpack.c.b16 %v903, %v903
      %v906 = vpack.c.b16 %v904, %v904
      %909 = vst.msk [vmem:[%s478] sm:$0xf] %vm875, %v905
      %910 = vst.msk [vmem:[%s478 + $0x4] sm:$0xf] %vm875, %v906
      %s911 = smul.u32 2, %s25
      %p912 = scmp.lt.s32.totalorder %s911, 9
      %s913 = scalar_select %p912, %s911, 9
      %s914 = smul.addr %s913, 4
      %s915 = scalar_lea.vmem %s12, %s914
      %s916 = smul.u32 2, %s25
      %p917 = scmp.lt.s32.totalorder %s916, 9
      %s918 = scalar_select %p917, %s916, 9
      %s919 = smul.addr %s918, 4
      %s920 = scalar_lea.vmem %s13, %s919
      // Predicated region
      $region69: #{fourier_block_forward.4} parent=67 // pred_check
        %p921 = pneg %p305
      $region70: #{fourier_block_forward.4} parent=67 // pred_check_branch
        %923 = sbr.rel (%p921) target = $region72
      $region71: #{fourier_block_forward.4} parent=67 // pred_region
        %s924 = smul.u32 2, %s25
      $region72: #{fourier_block_forward.4} parent=67 // pred_fallthru
        _
      // Predicated region
      $region73: #{fourier_block_forward.4} parent=67 // pred_check
        %p925 = pneg %p331
      $region74: #{fourier_block_forward.4} parent=67 // pred_check_branch
        %927 = sbr.rel (%p925) target = $region76
      $region75: #{fourier_block_forward.4} parent=67 // pred_region
        %s928 = smul.u32 2, %s25
      $region76: #{fourier_block_forward.4} parent=67 // pred_fallthru
        _
    $region68: #{fourier_block_forward.4} parent=5 // pred_fallthru
      _
    %p929 = scmp.le.s32.totalorder 2, %s20
    // Predicated region
    $region77: #{fourier_block_forward.4} parent=5 // pred_check
      %p930 = pneg %p929
    $region78: #{fourier_block_forward.4} parent=5 // pred_check_branch
      %932 = sbr.rel (%p930) target = $region80
    $region79: #{fourier_block_forward.4} parent=5 // pred_region
      %s933 = ssub.s32 %s20, 2
      // Predicated region
      $region81: #{fourier_block_forward.4} parent=79 // pred_check
        %p934 = pneg %p311
      $region82: #{fourier_block_forward.4} parent=79 // pred_check_branch
        %936 = sbr.rel (%p934) target = $region84
      $region83: #{fourier_block_forward.4} parent=79 // pred_region
        %s937 = smul.u32 2, %s26
        %p938 = scmp.lt.s32.totalorder %s937, 9
        %s939 = scalar_select %p938, %s937, 9
        %s940 = smul.addr %s939, 4
        %s941 = scalar_lea.vmem %s12, %s940
      $region84: #{fourier_block_forward.4} parent=79 // pred_fallthru
        _
      // Predicated region
      $region85: #{fourier_block_forward.4} parent=79 // pred_check
        %p942 = pneg %p337
      $region86: #{fourier_block_forward.4} parent=79 // pred_check_branch
        %944 = sbr.rel (%p942) target = $region88
      $region87: #{fourier_block_forward.4} parent=79 // pred_region
        %s945 = smul.u32 2, %s26
        %p946 = scmp.lt.s32.totalorder %s945, 9
        %s947 = scalar_select %p946, %s945, 9
        %s948 = smul.addr %s947, 4
        %s949 = scalar_lea.vmem %s13, %s948
      $region88: #{fourier_block_forward.4} parent=79 // pred_fallthru
        _
    $region80: #{fourier_block_forward.4} parent=5 // pred_fallthru
      _
  $region6: #{fourier_block_forward.4} parent=0 // loop_footer
    %s24 = sadd.s32 1, %s20
  $region7: #{fourier_block_forward.4} parent=0 // loop_footer_branch
    %19 = sbr.rel target = $region3
  $region8: #{fourier_block_forward.4} parent=0 // loop_exit
    _

// kernel: fourier_block_forward.5
$region0: #{fourier_block_forward.5}
  #allocation0 [shape = 'u32[]', space=smem, size = 0x4, offset = 0x4, fixed_abs, tag = 'smem constant byte address 0x4 - core index']
  #allocation1 [shape = 'u32[144,128]{1,0:T(1,128)}', space=vmem, size = 0x12000, scoped, tag = 'internal scratch']
  %s0 = inlined_call_operand.vmem [shape: f32[128,16], index: 0, kind: input, shape index: {}]
  %s1 = inlined_call_operand.vmem [shape: f32[128,16], index: 1, kind: input, shape index: {}]
  %s2 = inlined_call_operand.vmem [shape: f32[1,16], index: 2, kind: input, shape index: {}]
  %s3 = inlined_call_operand.vmem [shape: f32[1,16], index: 3, kind: input, shape index: {}]
  %s4 = inlined_call_operand.vmem [shape: bf16[16,64], index: 4, kind: input, shape index: {}]
  %s5 = inlined_call_operand.vmem [shape: f32[1,64], index: 5, kind: input, shape index: {}]
  %s6 = inlined_call_operand.vmem [shape: bf16[64,16], index: 6, kind: input, shape index: {}]
  %s7 = inlined_call_operand.vmem [shape: f32[1,16], index: 7, kind: input, shape index: {}]
  %s8 = inlined_call_operand.vmem [shape: f32[128,16], index: 8, kind: output, shape index: {}]
  %s9 = sld [smem:[#allocation0]]
  $region65: #{fourier_block_forward.5} parent=0
    _
  %s11 = ssub.s32 1, %s9
  %s12 = scalar_select 0, %s11, %s9
  loop: start=0, step=1, limit=4
  $region2: #{fourier_block_forward.5} parent=0 // loop_pre_header
    _
  $region3: #{fourier_block_forward.5} parent=0 // loop_header
    %s14 = sphi 0, %s18
    %p15 = scmp.ge.s32.totalorder %s14, 4
    %s24 = sphi 0, %s26
    %s27 = sphi 0, %s24
    %s28 = sphi 0, %s27
    %s44 = sphi 0, %s28
    %s50 = sphi 0, %s52
    %s53 = sphi 0, %s50
    %s54 = sphi 0, %s53
    %s70 = sphi 0, %s54
    %s74 = sphi 0, %s74
    %s76 = sphi 0, %s74
    %s77 = sphi 0, %s76
    %s91 = sphi 0, %s77
    %s95 = sphi 0, %s95
    %s97 = sphi 0, %s95
    %s98 = sphi 0, %s97
    %s112 = sphi 0, %s98
    %s116 = sphi 0, %s116
    %s118 = sphi 0, %s116
    %s119 = sphi 0, %s118
    %s133 = sphi 0, %s119
    %s137 = sphi 0, %s137
    %s139 = sphi 0, %s137
    %s140 = sphi 0, %s139
    %s154 = sphi 0, %s140
    %s158 = sphi 0, %s158
    %s160 = sphi 0, %s158
    %s161 = sphi 0, %s160
    %s175 = sphi 0, %s161
    %s179 = sphi 0, %s179
    %s181 = sphi 0, %s179
    %s182 = sphi 0, %s181
    %s196 = sphi 0, %s182
    %s202 = sphi 0, %s204
    %s205 = sphi 0, %s202
    %s206 = sphi 0, %s205
    %s222 = sphi 0, %s206
  $region4: #{fourier_block_forward.5} parent=0 // loop_header_branch
    %17 = sbr.rel (%p15) target = $region8
  $region5: #{fourier_block_forward.5} parent=0 // loop_body
    %s19 = ssub.s32 %s14, 1
    %s20 = ssub.s32 %s14, 2
    %s21 = sadd.s32 %s14, 1
    %s22 = ssub.s32 %s14, %s21
    %p23 = scmp.eq.s32.totalorder %s22, 0
    %s25 = sadd.s32 %s24, 1
    %s26 = scalar_select %p23, %s24, %s25
    %p29 = pneg %p23
    %p30 = scmp.eq.s32.totalorder %s14, 1
    %p31 = por %p29, %p30
    %p32 = scmp.ne.s32.totalorder %s24, %s27
    %p33 = scmp.eq.s32.totalorder %s14, 0
    %p34 = por %p32, %p33
    %p35 = scmp.ne.s32.totalorder %s24, %s27
    %p36 = scmp.eq.s32.totalorder %s19, 1
    %p37 = por %p35, %p36
    %p38 = scmp.ne.s32.totalorder %s27, %s28
    %p39 = scmp.eq.s32.totalorder %s19, 0
    %p40 = por %p38, %p39
    %p41 = scmp.ne.s32.totalorder %s27, %s28
    %p42 = scmp.eq.s32.totalorder %s20, 1
    %p43 = por %p41, %p42
    %p45 = scmp.ne.s32.totalorder %s28, %s44
    %p46 = scmp.eq.s32.totalorder %s20, 0
    %p47 = por %p45, %p46
    %s48 = ssub.s32 %s14, %s21
    %p49 = scmp.eq.s32.totalorder %s48, 0
    %s51 = sadd.s32 %s50, 1
    %s52 = scalar_select %p49, %s50, %s51
    %p55 = pneg %p49
    %p56 = scmp.eq.s32.totalorder %s14, 1
    %p57 = por %p55, %p56
    %p58 = scmp.ne.s32.totalorder %s50, %s53
    %p59 = scmp.eq.s32.totalorder %s14, 0
    %p60 = por %p58, %p59
    %p61 = scmp.ne.s32.totalorder %s50, %s53
    %p62 = scmp.eq.s32.totalorder %s19, 1
    %p63 = por %p61, %p62
    %p64 = scmp.ne.s32.totalorder %s53, %s54
    %p65 = scmp.eq.s32.totalorder %s19, 0
    %p66 = por %p64, %p65
    %p67 = scmp.ne.s32.totalorder %s53, %s54
    %p68 = scmp.eq.s32.totalorder %s20, 1
    %p69 = por %p67, %p68
    %p71 = scmp.ne.s32.totalorder %s54, %s70
    %p72 = scmp.eq.s32.totalorder %s20, 0
    %p73 = por %p71, %p72
    %s75 = sadd.s32 %s74, 1
    %p78 = scmp.eq.s32.totalorder %s14, 1
    %p79 = scmp.ne.s32.totalorder %s74, %s76
    %p80 = scmp.eq.s32.totalorder %s14, 0
    %p81 = por %p79, %p80
    %p82 = scmp.ne.s32.totalorder %s74, %s76
    %p83 = scmp.eq.s32.totalorder %s19, 1
    %p84 = por %p82, %p83
    %p85 = scmp.ne.s32.totalorder %s76, %s77
    %p86 = scmp.eq.s32.totalorder %s19, 0
    %p87 = por %p85, %p86
    %p88 = scmp.ne.s32.totalorder %s76, %s77
    %p89 = scmp.eq.s32.totalorder %s20, 1
    %p90 = por %p88, %p89
    %p92 = scmp.ne.s32.totalorder %s77, %s91
    %p93 = scmp.eq.s32.totalorder %s20, 0
    %p94 = por %p92, %p93
    %s96 = sadd.s32 %s95, 1
    %p99 = scmp.eq.s32.totalorder %s14, 1
    %p100 = scmp.ne.s32.totalorder %s95, %s97
    %p101 = scmp.eq.s32.totalorder %s14, 0
    %p102 = por %p100, %p101
    %p103 = scmp.ne.s32.totalorder %s95, %s97
    %p104 = scmp.eq.s32.totalorder %s19, 1
    %p105 = por %p103, %p104
    %p106 = scmp.ne.s32.totalorder %s97, %s98
    %p107 = scmp.eq.s32.totalorder %s19, 0
    %p108 = por %p106, %p107
    %p109 = scmp.ne.s32.totalorder %s97, %s98
    %p110 = scmp.eq.s32.totalorder %s20, 1
    %p111 = por %p109, %p110
    %p113 = scmp.ne.s32.totalorder %s98, %s112
    %p114 = scmp.eq.s32.totalorder %s20, 0
    %p115 = por %p113, %p114
    %s117 = sadd.s32 %s116, 1
    %p120 = scmp.eq.s32.totalorder %s14, 1
    %p121 = scmp.ne.s32.totalorder %s116, %s118
    %p122 = scmp.eq.s32.totalorder %s14, 0
    %p123 = por %p121, %p122
    %p124 = scmp.ne.s32.totalorder %s116, %s118
    %p125 = scmp.eq.s32.totalorder %s19, 1
    %p126 = por %p124, %p125
    %p127 = scmp.ne.s32.totalorder %s118, %s119
    %p128 = scmp.eq.s32.totalorder %s19, 0
    %p129 = por %p127, %p128
    %p130 = scmp.ne.s32.totalorder %s118, %s119
    %p131 = scmp.eq.s32.totalorder %s20, 1
    %p132 = por %p130, %p131
    %p134 = scmp.ne.s32.totalorder %s119, %s133
    %p135 = scmp.eq.s32.totalorder %s20, 0
    %p136 = por %p134, %p135
    %s138 = sadd.s32 %s137, 1
    %p141 = scmp.eq.s32.totalorder %s14, 1
    %p142 = scmp.ne.s32.totalorder %s137, %s139
    %p143 = scmp.eq.s32.totalorder %s14, 0
    %p144 = por %p142, %p143
    %p145 = scmp.ne.s32.totalorder %s137, %s139
    %p146 = scmp.eq.s32.totalorder %s19, 1
    %p147 = por %p145, %p146
    %p148 = scmp.ne.s32.totalorder %s139, %s140
    %p149 = scmp.eq.s32.totalorder %s19, 0
    %p150 = por %p148, %p149
    %p151 = scmp.ne.s32.totalorder %s139, %s140
    %p152 = scmp.eq.s32.totalorder %s20, 1
    %p153 = por %p151, %p152
    %p155 = scmp.ne.s32.totalorder %s140, %s154
    %p156 = scmp.eq.s32.totalorder %s20, 0
    %p157 = por %p155, %p156
    %s159 = sadd.s32 %s158, 1
    %p162 = scmp.eq.s32.totalorder %s14, 1
    %p163 = scmp.ne.s32.totalorder %s158, %s160
    %p164 = scmp.eq.s32.totalorder %s14, 0
    %p165 = por %p163, %p164
    %p166 = scmp.ne.s32.totalorder %s158, %s160
    %p167 = scmp.eq.s32.totalorder %s19, 1
    %p168 = por %p166, %p167
    %p169 = scmp.ne.s32.totalorder %s160, %s161
    %p170 = scmp.eq.s32.totalorder %s19, 0
    %p171 = por %p169, %p170
    %p172 = scmp.ne.s32.totalorder %s160, %s161
    %p173 = scmp.eq.s32.totalorder %s20, 1
    %p174 = por %p172, %p173
    %p176 = scmp.ne.s32.totalorder %s161, %s175
    %p177 = scmp.eq.s32.totalorder %s20, 0
    %p178 = por %p176, %p177
    %s180 = sadd.s32 %s179, 1
    %p183 = scmp.eq.s32.totalorder %s14, 1
    %p184 = scmp.ne.s32.totalorder %s179, %s181
    %p185 = scmp.eq.s32.totalorder %s14, 0
    %p186 = por %p184, %p185
    %p187 = scmp.ne.s32.totalorder %s179, %s181
    %p188 = scmp.eq.s32.totalorder %s19, 1
    %p189 = por %p187, %p188
    %p190 = scmp.ne.s32.totalorder %s181, %s182
    %p191 = scmp.eq.s32.totalorder %s19, 0
    %p192 = por %p190, %p191
    %p193 = scmp.ne.s32.totalorder %s181, %s182
    %p194 = scmp.eq.s32.totalorder %s20, 1
    %p195 = por %p193, %p194
    %p197 = scmp.ne.s32.totalorder %s182, %s196
    %p198 = scmp.eq.s32.totalorder %s20, 0
    %p199 = por %p197, %p198
    %s200 = ssub.s32 %s14, %s21
    %p201 = scmp.eq.s32.totalorder %s200, 0
    %s203 = sadd.s32 %s202, 1
    %s204 = scalar_select %p201, %s202, %s203
    %p207 = pneg %p201
    %p208 = scmp.eq.s32.totalorder %s14, 1
    %p209 = por %p207, %p208
    %p210 = scmp.ne.s32.totalorder %s202, %s205
    %p211 = scmp.eq.s32.totalorder %s14, 0
    %p212 = por %p210, %p211
    %p213 = scmp.ne.s32.totalorder %s202, %s205
    %p214 = scmp.eq.s32.totalorder %s19, 1
    %p215 = por %p213, %p214
    %p216 = scmp.ne.s32.totalorder %s205, %s206
    %p217 = scmp.eq.s32.totalorder %s19, 0
    %p218 = por %p216, %p217
    %p219 = scmp.ne.s32.totalorder %s205, %s206
    %p220 = scmp.eq.s32.totalorder %s20, 1
    %p221 = por %p219, %p220
    %p223 = scmp.ne.s32.totalorder %s206, %s222
    %p224 = scmp.eq.s32.totalorder %s20, 0
    %p225 = por %p223, %p224
    %p226 = scmp.le.s32.totalorder 1, %s14
    %p227 = scmp.lt.s32.totalorder %s14, 3
    %p228 = pnand %p226, %p227
    %p229 = pneg %p228
    // Predicated region
    $region9: #{fourier_block_forward.5} parent=5 // pred_check
      _
    $region10: #{fourier_block_forward.5} parent=5 // pred_check_branch
      %231 = sbr.rel (%p228) target = $region12
    $region11: #{fourier_block_forward.5} parent=5 // pred_region
      %s232 = ssub.s32 %s14, 1
      // Predicated region
      $region13: #{fourier_block_forward.5} parent=11 // pred_check
        %p233 = pneg %p87
      $region14: #{fourier_block_forward.5} parent=11 // pred_check_branch
        %235 = sbr.rel (%p233) target = $region16
      $region15: #{fourier_block_forward.5} parent=11 // pred_region
        _
      $region16: #{fourier_block_forward.5} parent=11 // pred_fallthru
        _
      // Predicated region
      $region17: #{fourier_block_forward.5} parent=11 // pred_check
        %p236 = pneg %p108
      $region18: #{fourier_block_forward.5} parent=11 // pred_check_branch
        %238 = sbr.rel (%p236) target = $region20
      $region19: #{fourier_block_forward.5} parent=11 // pred_region
        _
      $region20: #{fourier_block_forward.5} parent=11 // pred_fallthru
        _
      // Predicated region
      $region21: #{fourier_block_forward.5} parent=11 // pred_check
        %p239 = pneg %p129
      $region22: #{fourier_block_forward.5} parent=11 // pred_check_branch
        %241 = sbr.rel (%p239) target = $region24
      $region23: #{fourier_block_forward.5} parent=11 // pred_region
        _
      $region24: #{fourier_block_forward.5} parent=11 // pred_fallthru
        _
      // Predicated region
      $region25: #{fourier_block_forward.5} parent=11 // pred_check
        %p242 = pneg %p150
      $region26: #{fourier_block_forward.5} parent=11 // pred_check_branch
        %244 = sbr.rel (%p242) target = $region28
      $region27: #{fourier_block_forward.5} parent=11 // pred_region
        _
      $region28: #{fourier_block_forward.5} parent=11 // pred_fallthru
        _
      // Predicated region
      $region29: #{fourier_block_forward.5} parent=11 // pred_check
        %p245 = pneg %p171
      $region30: #{fourier_block_forward.5} parent=11 // pred_check_branch
        %247 = sbr.rel (%p245) target = $region32
      $region31: #{fourier_block_forward.5} parent=11 // pred_region
        _
      $region32: #{fourier_block_forward.5} parent=11 // pred_fallthru
        _
      // Predicated region
      $region33: #{fourier_block_forward.5} parent=11 // pred_check
        %p248 = pneg %p192
      $region34: #{fourier_block_forward.5} parent=11 // pred_check_branch
        %250 = sbr.rel (%p248) target = $region36
      $region35: #{fourier_block_forward.5} parent=11 // pred_region
        _
      $region36: #{fourier_block_forward.5} parent=11 // pred_fallthru
        _
    $region12: #{fourier_block_forward.5} parent=5 // pred_fallthru
      _
    %p251 = scmp.lt.s32.totalorder %s14, 2
    // Predicated region
    $region37: #{fourier_block_forward.5} parent=5 // pred_check
      %p252 = pneg %p251
    $region38: #{fourier_block_forward.5} parent=5 // pred_check_branch
      %254 = sbr.rel (%p252) target = $region40
    $region39: #{fourier_block_forward.5} parent=5 // pred_region
      // Predicated region
      $region41: #{fourier_block_forward.5} parent=39 // pred_check
        %p255 = pneg %p34
      $region42: #{fourier_block_forward.5} parent=39 // pred_check_branch
        %257 = sbr.rel (%p255) target = $region44
      $region43: #{fourier_block_forward.5} parent=39 // pred_region
        %s258 = smul.u32 8, %s14
        %p259 = scmp.lt.s32.totalorder %s258, 15
        %s260 = scalar_select %p259, %s258, 15
        %s261 = smul.addr %s260, 8
        %s262 = scalar_lea.vmem %s0, %s261
        %s263 = smul.u32 8, %s14
      $region44: #{fourier_block_forward.5} parent=39 // pred_fallthru
        _
      // Predicated region
      $region45: #{fourier_block_forward.5} parent=39 // pred_check
        %p264 = pneg %p60
      $region46: #{fourier_block_forward.5} parent=39 // pred_check_branch
        %266 = sbr.rel (%p264) target = $region48
      $region47: #{fourier_block_forward.5} parent=39 // pred_region
        %s267 = smul.u32 8, %s14
        %p268 = scmp.lt.s32.totalorder %s267, 15
        %s269 = scalar_select %p268, %s267, 15
        %s270 = smul.addr %s269, 8
        %s271 = scalar_lea.vmem %s1, %s270
        %s272 = smul.u32 8, %s14
      $region48: #{fourier_block_forward.5} parent=39 // pred_fallthru
        _
    $region40: #{fourier_block_forward.5} parent=5 // pred_fallthru
      _
    %p273 = scmp.le.s32.totalorder 1, %s14
    %p274 = scmp.lt.s32.totalorder %s14, 3
    %p275 = pnand %p273, %p274
    %p276 = pneg %p275
    // Predicated region
    $region49: #{fourier_block_forward.5} parent=5 // pred_check
      _
    $region50: #{fourier_block_forward.5} parent=5 // pred_check_branch
      %278 = sbr.rel (%p275) target = $region52
    $region51: #{fourier_block_forward.5} parent=5 // pred_region
      %s279 = ssub.s32 %s14, 1
      %s280 = smul.u32 8, %s19
      %p281 = scmp.lt.s32.totalorder %s280, 15
      %s282 = scalar_select %p281, %s280, 15
      %s283 = smul.addr %s282, 8
      %s284 = scalar_lea.vmem %s0, %s283
      %p285 = pneg %p40
      %p286 = pneg %p37
      %s287 = smul.u32 8, %s19
      %p288 = scmp.lt.s32.totalorder %s287, 15
      %s289 = scalar_select %p288, %s287, 15
      %s290 = smul.addr %s289, 8
      %s291 = scalar_lea.vmem %s1, %s290
      %p292 = pneg %p66
      %p293 = pneg %p63
      %p294 = pneg %p87
      %p295 = pneg %p84
      %p296 = pneg %p108
      %p297 = pneg %p105
      %p298 = pneg %p129
      %p299 = pneg %p126
      %p300 = pneg %p150
      %p301 = pneg %p147
      %p302 = pneg %p171
      %p303 = pneg %p168
      %p304 = pneg %p192
      %p305 = pneg %p189
      %p306 = pneg %p218
      %p307 = pneg %p215
      %s308 = smul.u32 8, %s19
      %p309 = scmp.lt.s32.totalorder %s308, 15
      %s310 = scalar_select %p309, %s308, 15
      %s311 = smul.addr %s310, 8
      %s312 = scalar_lea.vmem %s8, %s311
      %s313 = smul.u32 8, %s19
      %p314 = scmp.lt.s32.totalorder %s313, 15
      %s315 = scalar_select %p314, %s313, 15
      %s316 = smul.addr %s315, 8
      %s317 = scalar_lea.vmem %s0, %s316
      %s318 = smul.u32 8, %s19
      %s319 = smul.u32 8, %s19
      %p320 = scmp.lt.s32.totalorder %s319, 15
      %s321 = scalar_select %p320, %s319, 15
      %s322 = smul.addr %s321, 8
      %s323 = scalar_lea.vmem %s1, %s322
      %s324 = smul.u32 8, %s19
      %s325 = smul.u32 8, %s19
      %p326 = scmp.lt.s32.totalorder %s325, 15
      %s327 = scalar_select %p326, %s325, 15
      %s328 = smul.addr %s327, 8
      %s329 = scalar_lea.vmem %s8, %s328
      %s330 = smul.u32 8, %s19
      %v332 = vld [vmem:[%s317] sm:$0xff]
      %v333 = vld [vmem:[%s317 + $0x8] sm:$0xff]
      %v334 = vld [vmem:[%s317 + $0x10] sm:$0xff]
      %v335 = vld [vmem:[%s317 + $0x18] sm:$0xff]
      %v336 = vld [vmem:[%s317 + $0x20] sm:$0xff]
      %v337 = vld [vmem:[%s317 + $0x28] sm:$0xff]
      %v338 = vld [vmem:[%s317 + $0x30] sm:$0xff]
      %v339 = vld [vmem:[%s317 + $0x38] sm:$0xff]
      %v340 = vld [vmem:[%s2] sm:$0x1]
      %v341 = vld [vmem:[%s3] sm:$0x1]
      %vm342 = vcmask 130048
      %v343 = vsel %vm342, %v332, 0.0
      %344 = vadd.xlane.f32.xlu0 %v343
      %v345 = vpop.xlane.xlu0 %344
      %v346 = vsel %vm342, %v333, 0.0
      %347 = vadd.xlane.f32.xlu0 %v346
      %v348 = vpop.xlane.xlu0 %347
      %v349 = vsel %vm342, %v334, 0.0
      %350 = vadd.xlane.f32.xlu0 %v349
      %v351 = vpop.xlane.xlu0 %350
      %v352 = vsel %vm342, %v335, 0.0
      %353 = vadd.xlane.f32.xlu0 %v352
      %v354 = vpop.xlane.xlu0 %353
      %v355 = vsel %vm342, %v336, 0.0
      %356 = vadd.xlane.f32.xlu0 %v355
      %v357 = vpop.xlane.xlu0 %356
      %v358 = vsel %vm342, %v337, 0.0
      %359 = vadd.xlane.f32.xlu0 %v358
      %v360 = vpop.xlane.xlu0 %359
      %v361 = vsel %vm342, %v338, 0.0
      %362 = vadd.xlane.f32.xlu0 %v361
      %v363 = vpop.xlane.xlu0 %362
      %v364 = vsel %vm342, %v339, 0.0
      %365 = vadd.xlane.f32.xlu0 %v364
      %v366 = vpop.xlane.xlu0 %365
      %v367 = vrcp.pop 16.0
      %v368 = vmul.f32 %v345, %v367
      %v369 = vmul.f32 %v348, %v367
      %v370 = vmul.f32 %v351, %v367
      %v371 = vmul.f32 %v354, %v367
      %v372 = vmul.f32 %v357, %v367
      %v373 = vmul.f32 %v360, %v367
      %v374 = vmul.f32 %v363, %v367
      %v375 = vmul.f32 %v366, %v367
      %v376 = vsub.f32 %v332, %v368
      %v377 = vsub.f32 %v333, %v369
      %v378 = vsub.f32 %v334, %v370
      %v379 = vsub.f32 %v335, %v371
      %v380 = vsub.f32 %v336, %v372
      %v381 = vsub.f32 %v337, %v373
      %v382 = vsub.f32 %v338, %v374
      %v383 = vsub.f32 %v339, %v375
      %v384 = vmul.f32 %v376, %v376
      %v385 = vmul.f32 %v377, %v377
      %v386 = vmul.f32 %v378, %v378
      %v387 = vmul.f32 %v379, %v379
      %v388 = vmul.f32 %v380, %v380
      %v389 = vmul.f32 %v381, %v381
      %v390 = vmul.f32 %v382, %v382
      %v391 = vmul.f32 %v383, %v383
      %v392 = vsel %vm342, %v384, 0.0
      %393 = vadd.xlane.f32.xlu0 %v392
      %v394 = vpop.xlane.xlu0 %393
      %v395 = vsel %vm342, %v385, 0.0
      %396 = vadd.xlane.f32.xlu0 %v395
      %v397 = vpop.xlane.xlu0 %396
      %v398 = vsel %vm342, %v386, 0.0
      %399 = vadd.xlane.f32.xlu0 %v398
      %v400 = vpop.xlane.xlu0 %399
      %v401 = vsel %vm342, %v387, 0.0
      %402 = vadd.xlane.f32.xlu0 %v401
      %v403 = vpop.xlane.xlu0 %402
      %v404 = vsel %vm342, %v388, 0.0
      %405 = vadd.xlane.f32.xlu0 %v404
      %v406 = vpop.xlane.xlu0 %405
      %v407 = vsel %vm342, %v389, 0.0
      %408 = vadd.xlane.f32.xlu0 %v407
      %v409 = vpop.xlane.xlu0 %408
      %v410 = vsel %vm342, %v390, 0.0
      %411 = vadd.xlane.f32.xlu0 %v410
      %v412 = vpop.xlane.xlu0 %411
      %v413 = vsel %vm342, %v391, 0.0
      %414 = vadd.xlane.f32.xlu0 %v413
      %v415 = vpop.xlane.xlu0 %414
      %v416 = vmul.f32 %v394, %v367
      %v417 = vmul.f32 %v397, %v367
      %v418 = vmul.f32 %v400, %v367
      %v419 = vmul.f32 %v403, %v367
      %v420 = vmul.f32 %v406, %v367
      %v421 = vmul.f32 %v409, %v367
      %v422 = vmul.f32 %v412, %v367
      %v423 = vmul.f32 %v415, %v367
      %v424 = vadd.f32 %v416, 1e-05
      %v425 = vadd.f32 %v417, 1e-05
      %v426 = vadd.f32 %v418, 1e-05
      %v427 = vadd.f32 %v419, 1e-05
      %v428 = vadd.f32 %v420, 1e-05
      %v429 = vadd.f32 %v421, 1e-05
      %v430 = vadd.f32 %v422, 1e-05
      %v431 = vadd.f32 %v423, 1e-05
      %v432 = vrsqrt.pop %v424
      %v433 = vrsqrt.pop %v425
      %v434 = vrsqrt.pop %v426
      %v435 = vrsqrt.pop %v427
      %v436 = vrsqrt.pop %v428
      %v437 = vrsqrt.pop %v429
      %v438 = vrsqrt.pop %v430
      %v439 = vrsqrt.pop %v431
      %v440 = vmul.f32 %v376, %v432
      %v441 = vmul.f32 %v377, %v433
      %v442 = vmul.f32 %v378, %v434
      %v443 = vmul.f32 %v379, %v435
      %v444 = vmul.f32 %v380, %v436
      %v445 = vmul.f32 %v381, %v437
      %v446 = vmul.f32 %v382, %v438
      %v447 = vmul.f32 %v383, %v439
      %v449 = vlaneseq
      %v450 = vshrl.u32 %v449, 7
      %v451 = vsub.s32 0, %v450
      %v452 = vrot.slane %v340, %v451
      %v454 = vmul.f32 %v440, %v452
      %v455 = vmul.f32 %v441, %v452
      %v456 = vmul.f32 %v442, %v452
      %v457 = vmul.f32 %v443, %v452
      %v458 = vmul.f32 %v444, %v452
      %v459 = vmul.f32 %v445, %v452
      %v460 = vmul.f32 %v446, %v452
      %v461 = vmul.f32 %v447, %v452
      %v463 = vlaneseq
      %v464 = vshrl.u32 %v463, 7
      %v465 = vsub.s32 0, %v464
      %v466 = vrot.slane %v341, %v465
      %v468 = vadd.f32 %v454, %v466
      %v469 = vadd.f32 %v455, %v466
      %v470 = vadd.f32 %v456, %v466
      %v471 = vadd.f32 %v457, %v466
      %v472 = vadd.f32 %v458, %v466
      %v473 = vadd.f32 %v459, %v466
      %v474 = vadd.f32 %v460, %v466
      %v475 = vadd.f32 %v461, %v466
      %v476 = vpack.c.bf16 %v469, %v468
      %v477 = vpack.c.bf16 %v471, %v470
      %v478 = vpack.c.bf16 %v473, %v472
      %v479 = vpack.c.bf16 %v475, %v474
      %v480 = vld [vmem:[%s4] sm:$0xf]
      %v481 = vld [vmem:[%s4 + $0x4] sm:$0xf]
      %v482 = vld [vmem:[%s5] sm:$0x1]
      %v484 = vlaneseq
      %v485 = vshrl.u32 %v484, 7
      %v486 = vsub.s32 0, %v485
      %v487 = vrot.slane %v482, %v486
      %v491 = vunpack.c.l.b16 %v480
      %v492 = vunpack.c.l.b16 %v481
      %v493 = vpack.c.b16 %v492, %v491
      %v496 = vsel %vm342, %v476, 0
      %v499 = vsel %vm342, %v477, 0
      %v502 = vsel %vm342, %v478, 0
      %v505 = vsel %vm342, %v479, 0
      %507 = vmatprep.subr.bf16.mxu0 0
      %508 = vmatpush1.bf16.msra.mxu0 %v493
      %509 = vmatprep.subr.bf16.mxu0 0
      %510 = vmatpush1.bf16.msra.mxu0 0
      %511 = vmatprep.subr.bf16.mxu0 0
      %512 = vmatpush1.bf16.msra.mxu0 0
      %513 = vmatprep.subr.bf16.mxu0 0
      %514 = vmatpush1.bf16.msra.mxu0 0
      %515 = vmatprep.subr.bf16.mxu0 0
      %516 = vmatpush1.bf16.msra.mxu0 0
      %517 = vmatprep.subr.bf16.mxu0 0
      %518 = vmatpush1.bf16.msra.mxu0 0
      %519 = vmatprep.subr.bf16.mxu0 0
      %520 = vmatpush1.bf16.msra.mxu0 0
      %521 = vmatprep.subr.bf16.mxu0 0
      %522 = vmatpush1.bf16.msra.mxu0 0
      %523 = vmatprep.subr.bf16.mxu0 0
      %524 = vmatpush1.bf16.msra.mxu0 0
      %525 = vmatprep.subr.bf16.mxu0 0
      %526 = vmatpush1.bf16.msra.mxu0 0
      %527 = vmatprep.subr.bf16.mxu0 0
      %528 = vmatpush1.bf16.msra.mxu0 0
      %529 = vmatprep.subr.bf16.mxu0 0
      %530 = vmatpush1.bf16.msra.mxu0 0
      %531 = vmatprep.subr.bf16.mxu0 0
      %532 = vmatpush1.bf16.msra.mxu0 0
      %533 = vmatprep.subr.bf16.mxu0 0
      %534 = vmatpush1.bf16.msra.mxu0 0
      %535 = vmatprep.subr.bf16.mxu0 0
      %536 = vmatpush1.bf16.msra.mxu0 0
      %537 = vmatprep.subr.bf16.mxu0 0
      %538 = vmatpush1.bf16.msra.mxu0 0
      %539 = vmatprep.mubr.bf16.mxu0 0
      %540 = vmatmul.mubr.bf16.gmra.mrb[0].mxu0 %v496
      %v541 = vpop.f32.mrb[0].mxu0
      %v542 = vadd.f32 %v487, %v541
      %v543 = vpop.f32.mrb[0].mxu0
      %v544 = vpop.f32.mrb[0].mxu0
      %v545 = vadd.f32 %v487, %v544
      %v546 = vpop.f32.mrb[0].mxu0
      %547 = vmatprep.mubr.bf16.mxu0 0
      %548 = vmatmul.mubr.bf16.gmra.mrb[0].mxu0 %v499
      %v549 = vpop.f32.mrb[0].mxu0
      %v550 = vadd.f32 %v487, %v549
      %v551 = vpop.f32.mrb[0].mxu0
      %v552 = vpop.f32.mrb[0].mxu0
      %v553 = vadd.f32 %v487, %v552
      %v554 = vpop.f32.mrb[0].mxu0
      %555 = vmatprep.mubr.bf16.mxu0 0
      %556 = vmatmul.mubr.bf16.gmra.mrb[0].mxu0 %v502
      %v557 = vpop.f32.mrb[0].mxu0
      %v558 = vadd.f32 %v487, %v557
      %v559 = vpop.f32.mrb[0].mxu0
      %v560 = vpop.f32.mrb[0].mxu0
      %v561 = vadd.f32 %v487, %v560
      %v562 = vpop.f32.mrb[0].mxu0
      %563 = vmatprep.mubr.bf16.mxu0 0
      %564 = vmatmul.mubr.bf16.gmra.mrb[0].mxu0 %v505
      %v565 = vpop.f32.mrb[0].mxu0
      %v566 = vadd.f32 %v487, %v565
      %v567 = vpop.f32.mrb[0].mxu0
      %v568 = vpop.f32.mrb[0].mxu0
      %v569 = vadd.f32 %v487, %v568
      %v570 = vpop.f32.mrb[0].mxu0
      %571 = vdwg.mxu0
      %v572 = vmul.f32 %v542, 0.5
      %v573 = vmul.f32 %v545, 0.5
      %v574 = vmul.f32 %v550, 0.5
      %v575 = vmul.f32 %v553, 0.5
      %v576 = vmul.f32 %v558, 0.5
      %v577 = vmul.f32 %v561, 0.5
      %v578 = vmul.f32 %v566, 0.5
      %v579 = vmul.f32 %v569, 0.5
      %v580 = vmul.f32 %v542, 0.70710677
      %v581 = vmul.f32 %v545, 0.70710677
      %v582 = vmul.f32 %v550, 0.70710677
      %v583 = vmul.f32 %v553, 0.70710677
      %v584 = vmul.f32 %v558, 0.70710677
      %v585 = vmul.f32 %v561, 0.70710677
      %v586 = vmul.f32 %v566, 0.70710677
      %v587 = vmul.f32 %v569, 0.70710677
      %v588 = verf.f32.pop %v580
      %v589 = verf.f32.pop %v581
      %v590 = verf.f32.pop %v582
      %v591 = verf.f32.pop %v583
      %v592 = verf.f32.pop %v584
      %v593 = verf.f32.pop %v585
      %v594 = verf.f32.pop %v586
      %v595 = verf.f32.pop %v587
      %v596 = vadd.f32 %v588, 1.0
      %v597 = vadd.f32 %v589, 1.0
      %v598 = vadd.f32 %v590, 1.0
      %v599 = vadd.f32 %v591, 1.0
      %v600 = vadd.f32 %v592, 1.0
      %v601 = vadd.f32 %v593, 1.0
      %v602 = vadd.f32 %v594, 1.0
      %v603 = vadd.f32 %v595, 1.0
      %v604 = vmul.f32 %v572, %v596
      %v605 = vmul.f32 %v573, %v597
      %v606 = vmul.f32 %v574, %v598
      %v607 = vmul.f32 %v575, %v599
      %v608 = vmul.f32 %v576, %v600
      %v609 = vmul.f32 %v577, %v601
      %v610 = vmul.f32 %v578, %v602
      %v611 = vmul.f32 %v579, %v603
      %v612 = vpack.c.bf16 %v605, %v604
      %v613 = vpack.c.bf16 %v607, %v606
      %v614 = vpack.c.bf16 %v609, %v608
      %v615 = vpack.c.bf16 %v611, %v610
      %v616 = vld [vmem:[%s6] sm:$0xf]
      %v617 = vld [vmem:[%s6 + $0x4] sm:$0xf]
      %v618 = vld [vmem:[%s6 + $0x8] sm:$0xf]
      %v619 = vld [vmem:[%s6 + $0xc] sm:$0xf]
      %v620 = vld [vmem:[%s6 + $0x10] sm:$0xf]
      %v621 = vld [vmem:[%s6 + $0x14] sm:$0xf]
      %v622 = vld [vmem:[%s6 + $0x18] sm:$0xf]
      %v623 = vld [vmem:[%s6 + $0x1c] sm:$0xf]
      %v624 = vld [vmem:[%s7] sm:$0x1]
      %v626 = vlaneseq
      %v627 = vshrl.u32 %v626, 7
      %v628 = vsub.s32 0, %v627
      %v629 = vrot.slane %v624, %v628
      %v639 = vunpack.c.l.b16 %v616
      %v640 = vunpack.c.l.b16 %v617
      %v641 = vunpack.c.l.b16 %v618
      %v642 = vunpack.c.l.b16 %v619
      %v643 = vunpack.c.l.b16 %v620
      %v644 = vunpack.c.l.b16 %v621
      %v645 = vunpack.c.l.b16 %v622
      %v646 = vunpack.c.l.b16 %v623
      %v647 = vpack.c.b16 %v640, %v639
      %v648 = vpack.c.b16 %v642, %v641
      %v649 = vpack.c.b16 %v644, %v643
      %v650 = vpack.c.b16 %v646, %v645
      %vm655 = vcmask 523264
      %v657 = vsel %vm655, %v612, 0
      %v660 = vsel %vm655, %v613, 0
      %v663 = vsel %vm655, %v614, 0
      %v666 = vsel %vm655, %v615, 0
      %668 = vmatprep.subr.bf16.mxu0 0
      %669 = vmatpush1.bf16.msra.mxu0 %v647
      %670 = vmatprep.subr.bf16.mxu0 0
      %671 = vmatpush1.bf16.msra.mxu0 %v648
      %672 = vmatprep.subr.bf16.mxu0 0
      %673 = vmatpush1.bf16.msra.mxu0 %v649
      %674 = vmatprep.subr.bf16.mxu0 0
      %675 = vmatpush1.bf16.msra.mxu0 %v650
      %676 = vmatprep.subr.bf16.mxu0 0
      %677 = vmatpush1.bf16.msra.mxu0 0
      %678 = vmatprep.subr.bf16.mxu0 0
      %679 = vmatpush1.bf16.msra.mxu0 0
      %680 = vmatprep.subr.bf16.mxu0 0
      %681 = vmatpush1.bf16.msra.mxu0 0
      %682 = vmatprep.subr.bf16.mxu0 0
      %683 = vmatpush1.bf16.msra.mxu0 0
      %684 = vmatprep.subr.bf16.mxu0 0
      %685 = vmatpush1.bf16.msra.mxu0 0
      %686 = vmatprep.subr.bf16.mxu0 0
      %687 = vmatpush1.bf16.msra.mxu0 0
      %688 = vmatprep.subr.bf16.mxu0 0
      %689 = vmatpush1.bf16.msra.mxu0 0
      %690 = vmatprep.subr.bf16.mxu0 0
      %691 = vmatpush1.bf16.msra.mxu0 0
      %692 = vmatprep.subr.bf16.mxu0 0
      %693 = vmatpush1.bf16.msra.mxu0 0
      %694 = vmatprep.subr.bf16.mxu0 0
      %695 = vmatpush1.bf16.msra.mxu0 0
      %696 = vmatprep.subr.bf16.mxu0 0
      %697 = vmatpush1.bf16.msra.mxu0 0
      %698 = vmatprep.subr.bf16.mxu0 0
      %699 = vmatpush1.bf16.msra.mxu0 0
      %700 = vmatprep.mubr.bf16.mxu0 0
      %701 = vmatmul.mubr.bf16.gmra.mrb[0].mxu0 %v657
      %v702 = vpop.f32.mrb[0].mxu0
      %v703 = vadd.f32 %v629, %v702
      %v704 = vpop.f32.mrb[0].mxu0
      %v705 = vpop.f32.mrb[0].mxu0
      %v706 = vadd.f32 %v629, %v705
      %v707 = vpop.f32.mrb[0].mxu0
      %708 = vmatprep.mubr.bf16.mxu0 0
      %709 = vmatmul.mubr.bf16.gmra.mrb[0].mxu0 %v660
      %v710 = vpop.f32.mrb[0].mxu0
      %v711 = vadd.f32 %v629, %v710
      %v712 = vpop.f32.mrb[0].mxu0
      %v713 = vpop.f32.mrb[0].mxu0
      %v714 = vadd.f32 %v629, %v713
      %v715 = vpop.f32.mrb[0].mxu0
      %716 = vmatprep.mubr.bf16.mxu0 0
      %717 = vmatmul.mubr.bf16.gmra.mrb[0].mxu0 %v663
      %v718 = vpop.f32.mrb[0].mxu0
      %v719 = vadd.f32 %v629, %v718
      %v720 = vpop.f32.mrb[0].mxu0
      %v721 = vpop.f32.mrb[0].mxu0
      %v722 = vadd.f32 %v629, %v721
      %v723 = vpop.f32.mrb[0].mxu0
      %724 = vmatprep.mubr.bf16.mxu0 0
      %725 = vmatmul.mubr.bf16.gmra.mrb[0].mxu0 %v666
      %v726 = vpop.f32.mrb[0].mxu0
      %v727 = vadd.f32 %v629, %v726
      %v728 = vpop.f32.mrb[0].mxu0
      %v729 = vpop.f32.mrb[0].mxu0
      %v730 = vadd.f32 %v629, %v729
      %v731 = vpop.f32.mrb[0].mxu0
      %732 = vdwg.mxu0
      %v733 = vld [vmem:[%s323] sm:$0xff]
      %v734 = vld [vmem:[%s323 + $0x8] sm:$0xff]
      %v735 = vld [vmem:[%s323 + $0x10] sm:$0xff]
      %v736 = vld [vmem:[%s323 + $0x18] sm:$0xff]
      %v737 = vld [vmem:[%s323 + $0x20] sm:$0xff]
      %v738 = vld [vmem:[%s323 + $0x28] sm:$0xff]
      %v739 = vld [vmem:[%s323 + $0x30] sm:$0xff]
      %v740 = vld [vmem:[%s323 + $0x38] sm:$0xff]
      %v741 = vadd.f32 %v703, %v733
      %v742 = vadd.f32 %v706, %v734
      %v743 = vadd.f32 %v711, %v735
      %v744 = vadd.f32 %v714, %v736
      %v745 = vadd.f32 %v719, %v737
      %v746 = vadd.f32 %v722, %v738
      %v747 = vadd.f32 %v727, %v739
      %v748 = vadd.f32 %v730, %v740
      %749 = vst.msk [vmem:[%s329] sm:$0xff] %vm342, %v741
      %750 = vst.msk [vmem:[%s329 + $0x8] sm:$0xff] %vm342, %v742
      %751 = vst.msk [vmem:[%s329 + $0x10] sm:$0xff] %vm342, %v743
      %752 = vst.msk [vmem:[%s329 + $0x18] sm:$0xff] %vm342, %v744
      %753 = vst.msk [vmem:[%s329 + $0x20] sm:$0xff] %vm342, %v745
      %754 = vst.msk [vmem:[%s329 + $0x28] sm:$0xff] %vm342, %v746
      %755 = vst.msk [vmem:[%s329 + $0x30] sm:$0xff] %vm342, %v747
      %756 = vst.msk [vmem:[%s329 + $0x38] sm:$0xff] %vm342, %v748
      %s757 = smul.u32 8, %s19
      %p758 = scmp.lt.s32.totalorder %s757, 15
      %s759 = scalar_select %p758, %s757, 15
      %s760 = smul.addr %s759, 8
      %s761 = scalar_lea.vmem %s8, %s760
      // Predicated region
      $region53: #{fourier_block_forward.5} parent=51 // pred_check
        %p762 = pneg %p215
      $region54: #{fourier_block_forward.5} parent=51 // pred_check_branch
        %764 = sbr.rel (%p762) target = $region56
      $region55: #{fourier_block_forward.5} parent=51 // pred_region
        %s765 = smul.u32 8, %s19
      $region56: #{fourier_block_forward.5} parent=51 // pred_fallthru
        _
    $region52: #{fourier_block_forward.5} parent=5 // pred_fallthru
      _
    %p766 = scmp.le.s32.totalorder 2, %s14
    // Predicated region
    $region57: #{fourier_block_forward.5} parent=5 // pred_check
      %p767 = pneg %p766
    $region58: #{fourier_block_forward.5} parent=5 // pred_check_branch
      %769 = sbr.rel (%p767) target = $region60
    $region59: #{fourier_block_forward.5} parent=5 // pred_region
      %s770 = ssub.s32 %s14, 2
      // Predicated region
      $region61: #{fourier_block_forward.5} parent=59 // pred_check
        %p771 = pneg %p221
      $region62: #{fourier_block_forward.5} parent=59 // pred_check_branch
        %773 = sbr.rel (%p771) target = $region64
      $region63: #{fourier_block_forward.5} parent=59 // pred_region
        %s774 = smul.u32 8, %s20
        %p775 = scmp.lt.s32.totalorder %s774, 15
        %s776 = scalar_select %p775, %s774, 15
        %s777 = smul.addr %s776, 8
        %s778 = scalar_lea.vmem %s8, %s777
      $region64: #{fourier_block_forward.5} parent=59 // pred_fallthru
        _
    $region60: #{fourier_block_forward.5} parent=5 // pred_fallthru
      _
  $region6: #{fourier_block_forward.5} parent=0 // loop_footer
    %s18 = sadd.s32 1, %s14
  $region7: #{fourier_block_forward.5} parent=0 // loop_footer_branch
    %13 = sbr.rel target = $region3
  $region8: #{fourier_block_forward.5} parent=0 // loop_exit
    _

</llo_original>
